<compile_context>
chip_gen: v7x
topology: tpu7x:2x2x1
jax: 0.10.0
libtpu: 0.0.40
codegen_flags: <defaults>
</compile_context>

<pallas_src>
import math
import functools
import numpy as np

import jax
import jax.numpy as jnp
from jax import lax
from jax.experimental import pallas as pl
from jax.experimental.pallas import tpu as pltpu


# ----------------------------------------------------------------------------
# DCT filter bank (identical math to the PyTorch helper, use_bn=False branch:
# groups=1, expand_dim=0  ->  shape (1, nf, k, k))
# ----------------------------------------------------------------------------
def dct_filters_np(k=3, groups=1, expand_dim=0, level=None, DC=True, l1_norm=True):
    if level is None:
        nf = k ** 2 - int(not DC)
    elif level <= k:
        nf = level * (level + 1) // 2 - int(not DC)
    else:
        r = 2 * k - 1 - level
        nf = k ** 2 - r * (r + 1) // 2 - int(not DC)
    filter_bank = np.zeros((nf, k, k), dtype=np.float32)
    m = 0
    for i in range(k):
        for j in range(k):
            if (not DC and i == 0 and j == 0) or (level is not None and i + j >= level):
                continue
            for x in range(k):
                for y in range(k):
                    filter_bank[m, x, y] = (math.cos(math.pi * (x + 0.5) * i / k)
                                            * math.cos(math.pi * (y + 0.5) * j / k))
            if l1_norm:
                filter_bank[m, :, :] /= np.sum(np.abs(filter_bank[m, :, :]))
            else:
                ai = 1.0 if i > 0 else 1.0 / math.sqrt(2.0)
                aj = 1.0 if j > 0 else 1.0 / math.sqrt(2.0)
                filter_bank[m, :, :] *= 2.0 / k * ai * aj
            m += 1
    filter_bank = np.tile(np.expand_dims(filter_bank, axis=expand_dim), (groups, 1, 1, 1))
    return filter_bank  # (1, nf, k, k) for the no-bn path


def _round_up(x, m):
    return ((x + m - 1) // m) * m


def _vmem_capacity_bytes():
    # Generation-aware VMEM query; fall back to the smallest per-core capacity
    # across supported generations (v7x: 64 MiB) so tiles never over-commit.
    try:
        return int(pltpu.get_tpu_info().vmem_capacity_bytes)
    except Exception:
        return 64 * 1024 * 1024


# ----------------------------------------------------------------------------
# Pallas kernel: one lane-dense output tile of the stride-1 conv.
#   w_ref : (K*K, Cout, Cin)   per-tap weight slabs (compute dtype)
#   b_ref : (Cout, 1)          bias, f32
#   xm_ref: (1, Cin, TN)       main flat-image tile (compute dtype)
#   xh_ref: (1, Cin, TH)       right halo (covers max tap offset (K-1)*(Wp+1))
#   o_ref : (1, Cout, TN)      flattened output tile (TN multiple of 128)
#   win_ref: (Cin, TN+TH)      VMEM scratch holding main+halo contiguously
# ----------------------------------------------------------------------------
def _harm_conv_kernel(w_ref, b_ref, xm_ref, xh_ref, o_ref, win_ref, *, K, Wp, tn, cout):
    # Assemble the flat window once (both stores are 128-lane aligned).
    win_ref[:, :tn] = xm_ref[0]
    win_ref[:, tn:] = xh_ref[0]

    acc = jnp.zeros((cout, tn), jnp.float32)
    for kh in range(K):
        for kw in range(K):
            t = kh * K + kw
            off = kh * Wp + kw                      # static lane offset of this tap
            acc = acc + jnp.dot(w_ref[t], win_ref[:, off:off + tn],
                                preferred_element_type=jnp.float32)
    o_ref[0] = (acc + b_ref[...]).astype(o_ref.dtype)


def pallas_conv2d_nchw(x_nchw, filt_oihw, bias, stride=1, padding=0,
                       compute_dtype=jnp.bfloat16):
    """conv2d matching F.conv2d(x, filt, bias, stride, padding), groups=1, dilation=1.

    compute_dtype: MXU operand dtype (default bf16; accumulation is always f32).
    Pass None for full-f32 operands.
    """
    B, Cin, H, W = x_nchw.shape
    Cout, Cin_f, K, K2 = filt_oihw.shape
    assert Cin_f == Cin and K == K2

    out_dtype = x_nchw.dtype
    out_bytes = jnp.dtype(out_dtype).itemsize
    cdt = jnp.dtype(compute_dtype) if compute_dtype is not None else jnp.dtype(jnp.float32)
    elem = cdt.itemsize

    # ----- wrapper glue (plain JAX, 1x traffic): pad, flatten, cast -----------
    x = x_nchw
    if padding > 0:
        x = jnp.pad(x, ((0, 0), (0, 0), (padding, padding), (padding, padding)))
    Hp, Wp = x.shape[2], x.shape[3]
    assert Hp >= K and Wp >= K

    # Stride-1 conv computed in the kernel; stride > 1 applied by subsampling.
    OH1 = Hp - K + 1
    OW1 = Wp - K + 1
    L = Hp * Wp
    x_flat = x.reshape(B, Cin, L).astype(cdt)

    # Virtual flattened output index n = oh*Wp + ow (the (K-1) junk columns per
    # row and the tile-round tail are computed and sliced off afterwards).
    Nv = OH1 * Wp

    # Halo tile: covers the max tap offset, multiple of 128, divides the main tile.
    halo = (K - 1) * Wp + (K - 1)
    TH = _round_up(max(halo, 1), 128)

    # ----- generation-aware tile sizing ---------------------------------------
    cap = _vmem_capacity_bytes()
    budget = max(4 * 1024 * 1024, int(cap * 0.40))

    def step_bytes(tn_):
        pipe = (2 * (Cin * tn_ + Cin * TH) * elem          # double-buffered inputs
                + 2 * Cout * tn_ * out_bytes               # double-buffered output
                + 2 * (K * K * Cout * Cin * elem + Cout * 4))
        scratch = Cin * (tn_ + TH) * elem                  # window scratch
        tmps = 2 * Cout * tn_ * 4 + 2 * Cin * tn_ * elem   # acc / tap temporaries
        return pipe + scratch + tmps

    tn_target = 16384 if elem < 4 else 8192
    tn = _round_up(min(tn_target, max(Nv, 1)), TH)
    tn = max(tn, TH)
    while tn > TH and step_bytes(tn) > budget:
        tn = max(TH, (tn // 2) // TH * TH)
    # Expose >= 2 grid steps for the v7x megacore when batch alone can't.
    if B == 1 and Nv > TH:
        tn = min(tn, max(TH, _round_up(pl.cdiv(Nv, 2), TH)))

    Nv_pad = _round_up(Nv, tn)
    n_tiles = Nv_pad // tn
    ratio = tn // TH

    # Pad the flat image so every main tile and its halo block are in-bounds.
    Lpad = Nv_pad + tn
    assert Lpad >= L
    if Lpad != L:
        x_flat = jnp.pad(x_flat, ((0, 0), (0, 0), (0, Lpad - L)))

    # Per-tap weight slabs: w3[kh*K + kw, co, ci] = filt[co, ci, kh, kw]
    w3 = filt_oihw.transpose(2, 3, 0, 1).reshape(K * K, Cout, Cin).astype(cdt)
    b2d = bias.reshape(Cout, 1).astype(jnp.float32)

    kernel = functools.partial(_harm_conv_kernel, K=K, Wp=Wp, tn=tn, cout=Cout)

    cost = pl.CostEstimate(
        flops=2 * B * Cout * Nv_pad * Cin * K * K,
        transcendentals=0,
        bytes_accessed=(x_flat.size * elem + w3.size * elem + b2d.size * 4
                        + B * Cout * Nv_pad * out_bytes),
    )

    out_flat = pl.pallas_call(
        kernel,
        out_shape=jax.ShapeDtypeStruct((B, Cout, Nv_pad), out_dtype),
        grid_spec=pltpu.PrefetchScalarGridSpec(
            num_scalar_prefetch=0,
            grid=(B, n_tiles),
            in_specs=[
                pl.BlockSpec((K * K, Cout, Cin), lambda b, t: (0, 0, 0)),
                pl.BlockSpec((Cout, 1), lambda b, t: (0, 0)),
                pl.BlockSpec((1, Cin, tn), lambda b, t: (b, 0, t)),
                # Right halo: the TH-sized block starting exactly where the main
                # tile ends ((t+1)*tn elements == (t+1)*ratio halo blocks).
                pl.BlockSpec((1, Cin, TH), lambda b, t: (b, 0, (t + 1) * ratio)),
            ],
            out_specs=pl.BlockSpec((1, Cout, tn), lambda b, t: (b, 0, t)),
            scratch_shapes=[pltpu.VMEM((Cin, tn + TH), cdt)],
        ),
        compiler_params=pltpu.CompilerParams(
            dimension_semantics=("parallel", "parallel"),
            vmem_limit_bytes=int(cap * 0.75),
        ),
        cost_estimate=cost,
    )(w3, b2d, x_flat, x_flat)

    # Drop junk columns / padding; output is already in NCHW order.
    y = out_flat[:, :, :Nv].reshape(B, Cout, OH1, Wp)[:, :, :, :OW1]
    if stride > 1:
        # TODO(synk): stride>1 is handled by subsampling the stride-1 result; a
        # strided in-kernel gather would avoid the extra compute.
        y = y[:, :, ::stride, ::stride]
    return y


# ----------------------------------------------------------------------------
# Harm2d forward (no-bn path): build filter from DCT basis, then conv.
# ----------------------------------------------------------------------------
def harm2d_forward(x_nchw, weight, dct, bias, stride=1, padding=0,
                   dilation=1, groups=1, compute_dtype=jnp.bfloat16):
    # TODO(synk): dilation>1, groups>1 and the use_bn=True branch (depthwise DCT
    # conv + BatchNorm + 1x1 conv) are not exercised by the default constructor
    # and are not implemented here.
    assert dilation == 1 and groups == 1, "only dilation=1, groups=1 implemented"
    # weight: (no, ni, nf, 1, 1); dct: (1, nf, k, k)
    filt = jnp.sum(weight * dct, axis=2)               # (no, ni, k, k)
    if bias is None:
        bias = jnp.zeros((filt.shape[0],), dtype=jnp.float32)
    return pallas_conv2d_nchw(x_nchw, filt, bias, stride=stride, padding=padding,
                              compute_dtype=compute_dtype)


if __name__ == "__main__":
    # Small, module-consistent shapes.
    B, NI, NO = 2, 4, 8
    H = W = 16
    K = 3
    STRIDE = 1
    PADDING = 1

    key = jax.random.PRNGKey(0)
    kx, kw = jax.random.split(key)

    x = jax.random.normal(kx, (B, NI, H, W), dtype=jnp.float32)

    # Deterministic parameter init (mirrors Harm2d.__init__, use_bn=False).
    dct_np = dct_filters_np(k=K, groups=1, expand_dim=0, level=None, DC=True)  # (1, nf, k, k)
    nf = dct_np.shape[1]
    dct = jnp.asarray(dct_np)

    # kaiming_normal_(fan_out, relu) on tensor (no, ni, nf, 1, 1):
    fan_out = NO * nf * 1 * 1
    std = math.sqrt(2.0) / math.sqrt(fan_out)
    weight = std * jax.random.normal(kw, (NO, NI, nf, 1, 1), dtype=jnp.float32)
    bias = jnp.zeros((NO,), dtype=jnp.float32)

    # Reference (plain JAX / XLA conv).
    filt_ref = jnp.sum(weight * dct, axis=2)
    y_ref = lax.conv_general_dilated(
        x, filt_ref, window_strides=(STRIDE, STRIDE),
        padding=[(PADDING, PADDING), (PADDING, PADDING)],
        dimension_numbers=("NCHW", "OIHW", "NCHW"),
    ) + bias[None, :, None, None]

    # Default path: bf16 MXU operands, f32 accumulation.
    y_bf16 = jax.block_until_ready(
        harm2d_forward(x, weight, dct, bias, stride=STRIDE, padding=PADDING))
    assert y_bf16.shape == y_ref.shape, (y_bf16.shape, y_ref.shape)
    np.testing.assert_allclose(np.asarray(y_bf16), np.asarray(y_ref), rtol=5e-2, atol=5e-2)

    # Full-f32 operand path: tight check against the reference.
    y_f32 = jax.block_until_ready(
        harm2d_forward(x, weight, dct, bias, stride=STRIDE, padding=PADDING,
                       compute_dtype=None))
    np.testing.assert_allclose(np.asarray(y_f32), np.asarray(y_ref), rtol=1e-4, atol=1e-4)

    print("KERNEL_OK")
</pallas_src>

<mosaic_0001>
module attributes {stable_mosaic.version = 11 : i64} {
  func.func @_harm_conv_kernel(%arg0: i32, %arg1: i32, %arg2: memref<9x8x4xbf16, #tpu.memory_space<vmem>>, %arg3: memref<8x1xf32, #tpu.memory_space<vmem>>, %arg4: memref<1x4x384xbf16, #tpu.memory_space<vmem>>, %arg5: memref<1x4x128xbf16, #tpu.memory_space<vmem>>, %arg6: memref<1x8x384xf32, #tpu.memory_space<vmem>>, %arg7: memref<4x512xbf16, #tpu.memory_space<vmem>>) attributes {dimension_semantics = [#tpu.dimension_semantics<parallel>, #tpu.dimension_semantics<parallel>], iteration_bounds = array<i64: 2, 1>, scalar_prefetch = 0 : i64, scratch_operands = 1 : i64, tpu.core_type = #tpu.core_type<tc>, window_params = [{pipeline_mode = #tpu.pipeline_mode<synchronous>, transform_indices = @transform_0, window_bounds = array<i64: 9, 8, 4>}, {pipeline_mode = #tpu.pipeline_mode<synchronous>, transform_indices = @transform_1, window_bounds = array<i64: 8, 1>}, {transform_indices = @transform_2, window_bounds = array<i64: 1, 4, 384>}, {transform_indices = @transform_3, window_bounds = array<i64: 1, 4, 128>}, {transform_indices = @transform_4, window_bounds = array<i64: 1, 8, 384>}]} {
    %c0 = arith.constant 0 : index
    %c0_0 = arith.constant 0 : index
    %c0_1 = arith.constant 0 : index
    %0 = vector.load %arg4[%c0, %c0_0, %c0_1] : memref<1x4x384xbf16, #tpu.memory_space<vmem>>, vector<1x4x384xbf16>
    %1 = vector.shape_cast %0 : vector<1x4x384xbf16> to vector<4x384xbf16>
    %c0_2 = arith.constant 0 : index
    %c0_3 = arith.constant 0 : index
    %2 = vector.load %arg7[%c0_2, %c0_3] : memref<4x512xbf16, #tpu.memory_space<vmem>>, vector<4x384xbf16>
    tpu.vector_store %arg7[%c0_2, %c0_3], %1 {strides = array<i32>} : memref<4x512xbf16, #tpu.memory_space<vmem>>, vector<4x384xbf16>,
    %c0_4 = arith.constant 0 : index
    %c0_5 = arith.constant 0 : index
    %c0_6 = arith.constant 0 : index
    %3 = vector.load %arg5[%c0_4, %c0_5, %c0_6] : memref<1x4x128xbf16, #tpu.memory_space<vmem>>, vector<1x4x128xbf16>
    %4 = vector.shape_cast %3 : vector<1x4x128xbf16> to vector<4x128xbf16>
    %c0_7 = arith.constant 0 : index
    %c384 = arith.constant 384 : index
    %5 = vector.load %arg7[%c0_7, %c384] : memref<4x512xbf16, #tpu.memory_space<vmem>>, vector<4x128xbf16>
    tpu.vector_store %arg7[%c0_7, %c384], %4 {strides = array<i32>} : memref<4x512xbf16, #tpu.memory_space<vmem>>, vector<4x128xbf16>,
    %cst = arith.constant 0.000000e+00 : f32
    %6 = vector.broadcast %cst : f32 to vector<8x384xf32>
    %c0_8 = arith.constant 0 : index
    %c0_9 = arith.constant 0 : index
    %c0_10 = arith.constant 0 : index
    %7 = vector.load %arg2[%c0_8, %c0_9, %c0_10] : memref<9x8x4xbf16, #tpu.memory_space<vmem>>, vector<1x8x4xbf16>
    %8 = vector.shape_cast %7 : vector<1x8x4xbf16> to vector<8x4xbf16>
    %c0_11 = arith.constant 0 : index
    %c0_12 = arith.constant 0 : index
    %9 = vector.load %arg7[%c0_11, %c0_12] : memref<4x512xbf16, #tpu.memory_space<vmem>>, vector<4x384xbf16>
    %cst_13 = arith.constant dense<0.000000e+00> : vector<8x384xf32>
    %10 = tpu.matmul %8, %9, %cst_13 {dimension_numbers = #tpu.dot_dimension_numbers<[1], [0], [0], [1], [0, 0, 1, 1], [], []>} : vector<8x4xbf16>, vector<4x384xbf16>, vector<8x384xf32> -> vector<8x384xf32>
    %11 = arith.addf %6, %10 : vector<8x384xf32>
    %c1 = arith.constant 1 : index
    %c0_14 = arith.constant 0 : index
    %c0_15 = arith.constant 0 : index
    %12 = vector.load %arg2[%c1, %c0_14, %c0_15] : memref<9x8x4xbf16, #tpu.memory_space<vmem>>, vector<1x8x4xbf16>
    %13 = vector.shape_cast %12 : vector<1x8x4xbf16> to vector<8x4xbf16>
    %c0_16 = arith.constant 0 : index
    %c1_17 = arith.constant 1 : index
    %14 = vector.load %arg7[%c0_16, %c1_17] : memref<4x512xbf16, #tpu.memory_space<vmem>>, vector<4x384xbf16>
    %cst_18 = arith.constant dense<0.000000e+00> : vector<8x384xf32>
    %15 = tpu.matmul %13, %14, %cst_18 {dimension_numbers = #tpu.dot_dimension_numbers<[1], [0], [0], [1], [0, 0, 1, 1], [], []>} : vector<8x4xbf16>, vector<4x384xbf16>, vector<8x384xf32> -> vector<8x384xf32>
    %16 = arith.addf %11, %15 : vector<8x384xf32>
    %c2 = arith.constant 2 : index
    %c0_19 = arith.constant 0 : index
    %c0_20 = arith.constant 0 : index
    %17 = vector.load %arg2[%c2, %c0_19, %c0_20] : memref<9x8x4xbf16, #tpu.memory_space<vmem>>, vector<1x8x4xbf16>
    %18 = vector.shape_cast %17 : vector<1x8x4xbf16> to vector<8x4xbf16>
    %c0_21 = arith.constant 0 : index
    %c2_22 = arith.constant 2 : index
    %19 = vector.load %arg7[%c0_21, %c2_22] : memref<4x512xbf16, #tpu.memory_space<vmem>>, vector<4x384xbf16>
    %cst_23 = arith.constant dense<0.000000e+00> : vector<8x384xf32>
    %20 = tpu.matmul %18, %19, %cst_23 {dimension_numbers = #tpu.dot_dimension_numbers<[1], [0], [0], [1], [0, 0, 1, 1], [], []>} : vector<8x4xbf16>, vector<4x384xbf16>, vector<8x384xf32> -> vector<8x384xf32>
    %21 = arith.addf %16, %20 : vector<8x384xf32>
    %c3 = arith.constant 3 : index
    %c0_24 = arith.constant 0 : index
    %c0_25 = arith.constant 0 : index
    %22 = vector.load %arg2[%c3, %c0_24, %c0_25] : memref<9x8x4xbf16, #tpu.memory_space<vmem>>, vector<1x8x4xbf16>
    %23 = vector.shape_cast %22 : vector<1x8x4xbf16> to vector<8x4xbf16>
    %c0_26 = arith.constant 0 : index
    %c18 = arith.constant 18 : index
    %24 = vector.load %arg7[%c0_26, %c18] : memref<4x512xbf16, #tpu.memory_space<vmem>>, vector<4x384xbf16>
    %cst_27 = arith.constant dense<0.000000e+00> : vector<8x384xf32>
    %25 = tpu.matmul %23, %24, %cst_27 {dimension_numbers = #tpu.dot_dimension_numbers<[1], [0], [0], [1], [0, 0, 1, 1], [], []>} : vector<8x4xbf16>, vector<4x384xbf16>, vector<8x384xf32> -> vector<8x384xf32>
    %26 = arith.addf %21, %25 : vector<8x384xf32>
    %c4 = arith.constant 4 : index
    %c0_28 = arith.constant 0 : index
    %c0_29 = arith.constant 0 : index
    %27 = vector.load %arg2[%c4, %c0_28, %c0_29] : memref<9x8x4xbf16, #tpu.memory_space<vmem>>, vector<1x8x4xbf16>
    %28 = vector.shape_cast %27 : vector<1x8x4xbf16> to vector<8x4xbf16>
    %c0_30 = arith.constant 0 : index
    %c19 = arith.constant 19 : index
    %29 = vector.load %arg7[%c0_30, %c19] : memref<4x512xbf16, #tpu.memory_space<vmem>>, vector<4x384xbf16>
    %cst_31 = arith.constant dense<0.000000e+00> : vector<8x384xf32>
    %30 = tpu.matmul %28, %29, %cst_31 {dimension_numbers = #tpu.dot_dimension_numbers<[1], [0], [0], [1], [0, 0, 1, 1], [], []>} : vector<8x4xbf16>, vector<4x384xbf16>, vector<8x384xf32> -> vector<8x384xf32>
    %31 = arith.addf %26, %30 : vector<8x384xf32>
    %c5 = arith.constant 5 : index
    %c0_32 = arith.constant 0 : index
    %c0_33 = arith.constant 0 : index
    %32 = vector.load %arg2[%c5, %c0_32, %c0_33] : memref<9x8x4xbf16, #tpu.memory_space<vmem>>, vector<1x8x4xbf16>
    %33 = vector.shape_cast %32 : vector<1x8x4xbf16> to vector<8x4xbf16>
    %c0_34 = arith.constant 0 : index
    %c20 = arith.constant 20 : index
    %34 = vector.load %arg7[%c0_34, %c20] : memref<4x512xbf16, #tpu.memory_space<vmem>>, vector<4x384xbf16>
    %cst_35 = arith.constant dense<0.000000e+00> : vector<8x384xf32>
    %35 = tpu.matmul %33, %34, %cst_35 {dimension_numbers = #tpu.dot_dimension_numbers<[1], [0], [0], [1], [0, 0, 1, 1], [], []>} : vector<8x4xbf16>, vector<4x384xbf16>, vector<8x384xf32> -> vector<8x384xf32>
    %36 = arith.addf %31, %35 : vector<8x384xf32>
    %c6 = arith.constant 6 : index
    %c0_36 = arith.constant 0 : index
    %c0_37 = arith.constant 0 : index
    %37 = vector.load %arg2[%c6, %c0_36, %c0_37] : memref<9x8x4xbf16, #tpu.memory_space<vmem>>, vector<1x8x4xbf16>
    %38 = vector.shape_cast %37 : vector<1x8x4xbf16> to vector<8x4xbf16>
    %c0_38 = arith.constant 0 : index
    %c36 = arith.constant 36 : index
    %39 = vector.load %arg7[%c0_38, %c36] : memref<4x512xbf16, #tpu.memory_space<vmem>>, vector<4x384xbf16>
    %cst_39 = arith.constant dense<0.000000e+00> : vector<8x384xf32>
    %40 = tpu.matmul %38, %39, %cst_39 {dimension_numbers = #tpu.dot_dimension_numbers<[1], [0], [0], [1], [0, 0, 1, 1], [], []>} : vector<8x4xbf16>, vector<4x384xbf16>, vector<8x384xf32> -> vector<8x384xf32>
    %41 = arith.addf %36, %40 : vector<8x384xf32>
    %c7 = arith.constant 7 : index
    %c0_40 = arith.constant 0 : index
    %c0_41 = arith.constant 0 : index
    %42 = vector.load %arg2[%c7, %c0_40, %c0_41] : memref<9x8x4xbf16, #tpu.memory_space<vmem>>, vector<1x8x4xbf16>
    %43 = vector.shape_cast %42 : vector<1x8x4xbf16> to vector<8x4xbf16>
    %c0_42 = arith.constant 0 : index
    %c37 = arith.constant 37 : index
    %44 = vector.load %arg7[%c0_42, %c37] : memref<4x512xbf16, #tpu.memory_space<vmem>>, vector<4x384xbf16>
    %cst_43 = arith.constant dense<0.000000e+00> : vector<8x384xf32>
    %45 = tpu.matmul %43, %44, %cst_43 {dimension_numbers = #tpu.dot_dimension_numbers<[1], [0], [0], [1], [0, 0, 1, 1], [], []>} : vector<8x4xbf16>, vector<4x384xbf16>, vector<8x384xf32> -> vector<8x384xf32>
    %46 = arith.addf %41, %45 : vector<8x384xf32>
    %c8 = arith.constant 8 : index
    %c0_44 = arith.constant 0 : index
    %c0_45 = arith.constant 0 : index
    %47 = vector.load %arg2[%c8, %c0_44, %c0_45] : memref<9x8x4xbf16, #tpu.memory_space<vmem>>, vector<1x8x4xbf16>
    %48 = vector.shape_cast %47 : vector<1x8x4xbf16> to vector<8x4xbf16>
    %c0_46 = arith.constant 0 : index
    %c38 = arith.constant 38 : index
    %49 = vector.load %arg7[%c0_46, %c38] : memref<4x512xbf16, #tpu.memory_space<vmem>>, vector<4x384xbf16>
    %cst_47 = arith.constant dense<0.000000e+00> : vector<8x384xf32>
    %50 = tpu.matmul %48, %49, %cst_47 {dimension_numbers = #tpu.dot_dimension_numbers<[1], [0], [0], [1], [0, 0, 1, 1], [], []>} : vector<8x4xbf16>, vector<4x384xbf16>, vector<8x384xf32> -> vector<8x384xf32>
    %51 = arith.addf %46, %50 : vector<8x384xf32>
    %c0_48 = arith.constant 0 : index
    %c0_49 = arith.constant 0 : index
    %52 = vector.load %arg3[%c0_48, %c0_49] : memref<8x1xf32, #tpu.memory_space<vmem>>, vector<8x1xf32>
    %53 = vector.broadcast %52 : vector<8x1xf32> to vector<8x384xf32>
    %54 = arith.addf %51, %53 : vector<8x384xf32>
    %c0_50 = arith.constant 0 : index
    %c0_51 = arith.constant 0 : index
    %c0_52 = arith.constant 0 : index
    %55 = vector.load %arg6[%c0_50, %c0_51, %c0_52] : memref<1x8x384xf32, #tpu.memory_space<vmem>>, vector<1x8x384xf32>
    %56 = vector.shape_cast %55 : vector<1x8x384xf32> to vector<8x384xf32>
    %57 = vector.shape_cast %54 : vector<8x384xf32> to vector<1x8x384xf32>
    tpu.vector_store %arg6[%c0_50, %c0_51, %c0_52], %57 {strides = array<i32>} : memref<1x8x384xf32, #tpu.memory_space<vmem>>, vector<1x8x384xf32>,
    return
  }
  func.func @transform_0(%arg0: i32, %arg1: i32) -> (i32, i32, i32) {
    %c0_i32 = arith.constant 0 : i32
    %c0_i32_0 = arith.constant 0 : i32
    %c0_i32_1 = arith.constant 0 : i32
    %c0_i32_2 = arith.constant 0 : i32
    return %c0_i32, %c0_i32_0, %c0_i32_1 : i32, i32, i32
  }
  func.func @transform_1(%arg0: i32, %arg1: i32) -> (i32, i32) {
    %c0_i32 = arith.constant 0 : i32
    %c0_i32_0 = arith.constant 0 : i32
    %c0_i32_1 = arith.constant 0 : i32
    return %c0_i32, %c0_i32_0 : i32, i32
  }
  func.func @transform_2(%arg0: i32, %arg1: i32) -> (i32, i32, i32) {
    %c0_i32 = arith.constant 0 : i32
    %c0_i32_0 = arith.constant 0 : i32
    return %arg0, %c0_i32, %arg1 : i32, i32, i32
  }
  func.func @transform_3(%arg0: i32, %arg1: i32) -> (i32, i32, i32) {
    %c1_i32 = arith.constant 1 : i32
    %0 = arith.addi %arg1, %c1_i32 : i32
    %c3_i32 = arith.constant 3 : i32
    %1 = arith.muli %0, %c3_i32 : i32
    %c0_i32 = arith.constant 0 : i32
    %c0_i32_0 = arith.constant 0 : i32
    return %arg0, %c0_i32, %1 : i32, i32, i32
  }
  func.func @transform_4(%arg0: i32, %arg1: i32) -> (i32, i32, i32) {
    %c0_i32 = arith.constant 0 : i32
    %c0_i32_0 = arith.constant 0 : i32
    return %arg0, %c0_i32, %arg1 : i32, i32, i32
  }
}

</mosaic_0001>

<llo_original>
// kernel: tpu_custom_call.1
$region0: #{tpu_custom_call.1}
  #allocation0 [shape = 'u32[]', space=smem, size = 0x4, offset = 0x4, fixed_abs, tag = 'smem constant byte address 0x4 - core index']
  #allocation1 [shape = 'u32[144,128]{1,0:T(1,128)}', space=vmem, size = 0x12000, scoped, tag = 'internal scratch']
  #allocation2 [shape = 'bf16[4,512]{1,0:T(4,128)(2,1)}', space=vmem, size = 0x1000, scoped, tag = 'scratch operand']
  %s0 = inlined_call_operand.vmem [shape: bf16[9,8,4], index: 0, kind: input, shape index: {}]
  %s1 = inlined_call_operand.vmem [shape: f32[8,1], index: 1, kind: input, shape index: {}]
  %s2 = inlined_call_operand.vmem [shape: bf16[2,4,768], index: 2, kind: input, shape index: {}]
  %s3 = inlined_call_operand.vmem [shape: bf16[2,4,768], index: 3, kind: input, shape index: {}]
  %s4 = inlined_call_operand.hbm [shape: f32[2,8,384], index: 4, kind: output, shape index: {}]
  %s5 = sld [smem:[#allocation0]]
  $region49: #{tpu_custom_call.1} parent=0
    _
  %s7 = ssub.s32 1, %s5
  %s8 = scalar_select 0, %s7, %s5
  $region1: #{tpu_custom_call.1} parent=0
    #allocation3 [shape = 'u8[24576]{0}', space=vmem, size = 0x6000, scoped, tag = 'output window, operand 0']
    #allocation4 [shape = 's32[2]{0}', space=sflag, size = 0x8, scoped, tag = 'scoped memory for tpu_custom_call.1']
    %9 = vsyncpa [#allocation4], 0
    %s10 = scalar_lea.sflag [#allocation4], 1
    %11 = vsyncpa %s10, 0
    loop: start=0, step=1, limit=4
    $region2: #{tpu_custom_call.1} parent=1 // loop_pre_header
      _
    $region3: #{tpu_custom_call.1} parent=1 // loop_header
      %s13 = sphi 0, %s17
      %p14 = scmp.ge.s32.totalorder %s13, 4
      %s20 = sphi 0, %s32
      %s21 = sphi 0, %s28
      %s22 = sphi 0, %s20
      %s23 = sphi 0, %s21
      %s24 = sphi 0, %s22
      %s25 = sphi 0, %s23
      %s33 = sphi 0, %s33
      %s35 = sphi 0, %s33
      %s36 = sphi 0, %s35
      %s50 = sphi 0, %s36
      %s54 = sphi 0, %s54
      %s56 = sphi 0, %s54
      %s57 = sphi 0, %s56
      %s71 = sphi 0, %s57
      %s79 = sphi 0, %s81
      %s82 = sphi 0, %s79
      %s83 = sphi 0, %s82
      %s99 = sphi 0, %s83
      %s111 = sphi 0, %s113
      %s114 = sphi 0, %s111
      %s115 = sphi 0, %s114
      %s131 = sphi 0, %s115
      %s139 = sphi 0, %s141
      %s142 = sphi 0, %s139
      %s143 = sphi 0, %s142
      %s159 = sphi 0, %s143
    $region4: #{tpu_custom_call.1} parent=1 // loop_header_branch
      %16 = sbr.rel (%p14) target = $region8
    $region5: #{tpu_custom_call.1} parent=1 // loop_body
      %s18 = ssub.s32 %s13, 1
      %s19 = ssub.s32 %s13, 2
      %s26 = sadd.s32 1, %s21
      %p27 = scmp.ge.s32.totalorder %s26, 1
      %s28 = scalar_select %p27, 0, %s26
      %s29 = sadd.s32 1, %s20
      %s30 = scalar_select %p27, %s29, %s20
      %p31 = scmp.ge.s32.totalorder %s30, 2
      %s32 = scalar_select %p31, 0, %s30
      %s34 = sadd.s32 %s33, 1
      %p37 = scmp.eq.s32.totalorder %s13, 1
      %p38 = scmp.ne.s32.totalorder %s33, %s35
      %p39 = scmp.eq.s32.totalorder %s13, 0
      %p40 = por %p38, %p39
      %p41 = scmp.ne.s32.totalorder %s33, %s35
      %p42 = scmp.eq.s32.totalorder %s18, 1
      %p43 = por %p41, %p42
      %p44 = scmp.ne.s32.totalorder %s35, %s36
      %p45 = scmp.eq.s32.totalorder %s18, 0
      %p46 = por %p44, %p45
      %p47 = scmp.ne.s32.totalorder %s35, %s36
      %p48 = scmp.eq.s32.totalorder %s19, 1
      %p49 = por %p47, %p48
      %p51 = scmp.ne.s32.totalorder %s36, %s50
      %p52 = scmp.eq.s32.totalorder %s19, 0
      %p53 = por %p51, %p52
      %s55 = sadd.s32 %s54, 1
      %p58 = scmp.eq.s32.totalorder %s13, 1
      %p59 = scmp.ne.s32.totalorder %s54, %s56
      %p60 = scmp.eq.s32.totalorder %s13, 0
      %p61 = por %p59, %p60
      %p62 = scmp.ne.s32.totalorder %s54, %s56
      %p63 = scmp.eq.s32.totalorder %s18, 1
      %p64 = por %p62, %p63
      %p65 = scmp.ne.s32.totalorder %s56, %s57
      %p66 = scmp.eq.s32.totalorder %s18, 0
      %p67 = por %p65, %p66
      %p68 = scmp.ne.s32.totalorder %s56, %s57
      %p69 = scmp.eq.s32.totalorder %s19, 1
      %p70 = por %p68, %p69
      %p72 = scmp.ne.s32.totalorder %s57, %s71
      %p73 = scmp.eq.s32.totalorder %s19, 0
      %p74 = por %p72, %p73
      %s75 = ssub.s32 %s20, %s32
      %s76 = ssub.s32 %s21, %s28
      %s77 = sor.u32 %s75, %s76
      %p78 = scmp.eq.s32.totalorder %s77, 0
      %s80 = sadd.s32 %s79, 1
      %s81 = scalar_select %p78, %s79, %s80
      %p84 = pneg %p78
      %p85 = scmp.eq.s32.totalorder %s13, 1
      %p86 = por %p84, %p85
      %p87 = scmp.ne.s32.totalorder %s79, %s82
      %p88 = scmp.eq.s32.totalorder %s13, 0
      %p89 = por %p87, %p88
      %p90 = scmp.ne.s32.totalorder %s79, %s82
      %p91 = scmp.eq.s32.totalorder %s18, 1
      %p92 = por %p90, %p91
      %p93 = scmp.ne.s32.totalorder %s82, %s83
      %p94 = scmp.eq.s32.totalorder %s18, 0
      %p95 = por %p93, %p94
      %p96 = scmp.ne.s32.totalorder %s82, %s83
      %p97 = scmp.eq.s32.totalorder %s19, 1
      %p98 = por %p96, %p97
      %p100 = scmp.ne.s32.totalorder %s83, %s99
      %p101 = scmp.eq.s32.totalorder %s19, 0
      %p102 = por %p100, %p101
      %s103 = sadd.s32 %s21, 1
      %s104 = smul.u32 %s103, 3
      %s105 = sadd.s32 %s28, 1
      %s106 = smul.u32 %s105, 3
      %s107 = ssub.s32 %s20, %s32
      %s108 = ssub.s32 %s104, %s106
      %s109 = sor.u32 %s107, %s108
      %p110 = scmp.eq.s32.totalorder %s109, 0
      %s112 = sadd.s32 %s111, 1
      %s113 = scalar_select %p110, %s111, %s112
      %p116 = pneg %p110
      %p117 = scmp.eq.s32.totalorder %s13, 1
      %p118 = por %p116, %p117
      %p119 = scmp.ne.s32.totalorder %s111, %s114
      %p120 = scmp.eq.s32.totalorder %s13, 0
      %p121 = por %p119, %p120
      %p122 = scmp.ne.s32.totalorder %s111, %s114
      %p123 = scmp.eq.s32.totalorder %s18, 1
      %p124 = por %p122, %p123
      %p125 = scmp.ne.s32.totalorder %s114, %s115
      %p126 = scmp.eq.s32.totalorder %s18, 0
      %p127 = por %p125, %p126
      %p128 = scmp.ne.s32.totalorder %s114, %s115
      %p129 = scmp.eq.s32.totalorder %s19, 1
      %p130 = por %p128, %p129
      %p132 = scmp.ne.s32.totalorder %s115, %s131
      %p133 = scmp.eq.s32.totalorder %s19, 0
      %p134 = por %p132, %p133
      %s135 = ssub.s32 %s20, %s32
      %s136 = ssub.s32 %s21, %s28
      %s137 = sor.u32 %s135, %s136
      %p138 = scmp.eq.s32.totalorder %s137, 0
      %s140 = sadd.s32 %s139, 1
      %s141 = scalar_select %p138, %s139, %s140
      %p144 = pneg %p138
      %p145 = scmp.eq.s32.totalorder %s13, 1
      %p146 = por %p144, %p145
      %p147 = scmp.ne.s32.totalorder %s139, %s142
      %p148 = scmp.eq.s32.totalorder %s13, 0
      %p149 = por %p147, %p148
      %p150 = scmp.ne.s32.totalorder %s139, %s142
      %p151 = scmp.eq.s32.totalorder %s18, 1
      %p152 = por %p150, %p151
      %p153 = scmp.ne.s32.totalorder %s142, %s143
      %p154 = scmp.eq.s32.totalorder %s18, 0
      %p155 = por %p153, %p154
      %p156 = scmp.ne.s32.totalorder %s142, %s143
      %p157 = scmp.eq.s32.totalorder %s19, 1
      %p158 = por %p156, %p157
      %p160 = scmp.ne.s32.totalorder %s143, %s159
      %p161 = scmp.eq.s32.totalorder %s19, 0
      %p162 = por %p160, %p161
      %p163 = scmp.le.s32.totalorder 1, %s13
      %p164 = scmp.lt.s32.totalorder %s13, 3
      %p165 = pnand %p163, %p164
      %p166 = pneg %p165
      // Predicated region
      $region9: #{tpu_custom_call.1} parent=5 // pred_check
        _
      $region10: #{tpu_custom_call.1} parent=5 // pred_check_branch
        %168 = sbr.rel (%p165) target = $region12
      $region11: #{tpu_custom_call.1} parent=5 // pred_region
        %s169 = ssub.s32 %s13, 1
        // Predicated region
        $region13: #{tpu_custom_call.1} parent=11 // pred_check
          %p170 = pneg %p46
        $region14: #{tpu_custom_call.1} parent=11 // pred_check_branch
          %172 = sbr.rel (%p170) target = $region16
        $region15: #{tpu_custom_call.1} parent=11 // pred_region
          _
        $region16: #{tpu_custom_call.1} parent=11 // pred_fallthru
          _
        // Predicated region
        $region17: #{tpu_custom_call.1} parent=11 // pred_check
          %p173 = pneg %p67
        $region18: #{tpu_custom_call.1} parent=11 // pred_check_branch
          %175 = sbr.rel (%p173) target = $region20
        $region19: #{tpu_custom_call.1} parent=11 // pred_region
          _
        $region20: #{tpu_custom_call.1} parent=11 // pred_fallthru
          _
      $region12: #{tpu_custom_call.1} parent=5 // pred_fallthru
        _
      %p176 = scmp.lt.s32.totalorder %s13, 2
      // Predicated region
      $region21: #{tpu_custom_call.1} parent=5 // pred_check
        %p177 = pneg %p176
      $region22: #{tpu_custom_call.1} parent=5 // pred_check_branch
        %179 = sbr.rel (%p177) target = $region24
      $region23: #{tpu_custom_call.1} parent=5 // pred_region
        // Predicated region
        $region25: #{tpu_custom_call.1} parent=23 // pred_check
          %p180 = pneg %p89
        $region26: #{tpu_custom_call.1} parent=23 // pred_check_branch
          %182 = sbr.rel (%p180) target = $region28
        $region27: #{tpu_custom_call.1} parent=23 // pred_region
          %s183 = smul.u32 3, %s21
          %p184 = scmp.lt.s32.totalorder %s20, 1
          %s185 = scalar_select %p184, %s20, 1
          %p186 = scmp.lt.s32.totalorder %s183, 5
          %s187 = scalar_select %p186, %s183, 5
          %s188 = smul.addr %s185, 6
          %s189 = sadd.s32 %s187, %s188
          %s190 = smul.addr %s189, 2
          %s191 = scalar_lea.vmem %s2, %s190
          %s192 = smul.u32 3, %s21
        $region28: #{tpu_custom_call.1} parent=23 // pred_fallthru
          _
        // Predicated region
        $region29: #{tpu_custom_call.1} parent=23 // pred_check
          %p193 = pneg %p121
        $region30: #{tpu_custom_call.1} parent=23 // pred_check_branch
          %195 = sbr.rel (%p193) target = $region32
        $region31: #{tpu_custom_call.1} parent=23 // pred_region
          %s196 = sadd.s32 %s21, 1
          %s197 = smul.u32 %s196, 3
          %p198 = scmp.lt.s32.totalorder %s20, 1
          %s199 = scalar_select %p198, %s20, 1
          %p200 = scmp.lt.s32.totalorder %s197, 5
          %s201 = scalar_select %p200, %s197, 5
          %s202 = smul.addr %s199, 6
          %s203 = sadd.s32 %s201, %s202
          %s204 = smul.addr %s203, 2
          %s205 = scalar_lea.vmem %s3, %s204
          %s206 = sadd.s32 %s21, 1
          %s207 = smul.u32 %s206, 3
        $region32: #{tpu_custom_call.1} parent=23 // pred_fallthru
          _
      $region24: #{tpu_custom_call.1} parent=5 // pred_fallthru
        _
      %p208 = scmp.le.s32.totalorder 1, %s13
      %p209 = scmp.lt.s32.totalorder %s13, 3
      %p210 = pnand %p208, %p209
      %p211 = pneg %p210
      // Predicated region
      $region33: #{tpu_custom_call.1} parent=5 // pred_check
        _
      $region34: #{tpu_custom_call.1} parent=5 // pred_check_branch
        %213 = sbr.rel (%p210) target = $region36
      $region35: #{tpu_custom_call.1} parent=5 // pred_region
        %s214 = ssub.s32 %s13, 1
        %p215 = pneg %p46
        %p216 = pneg %p43
        %p217 = pneg %p67
        %p218 = pneg %p64
        %s219 = smul.u32 3, %s23
        %p220 = scmp.lt.s32.totalorder %s22, 1
        %s221 = scalar_select %p220, %s22, 1
        %p222 = scmp.lt.s32.totalorder %s219, 5
        %s223 = scalar_select %p222, %s219, 5
        %s224 = smul.addr %s221, 6
        %s225 = sadd.s32 %s223, %s224
        %s226 = smul.addr %s225, 2
        %s227 = scalar_lea.vmem %s2, %s226
        %p228 = pneg %p95
        %p229 = pneg %p92
        %s230 = sadd.s32 %s23, 1
        %s231 = smul.u32 %s230, 3
        %p232 = scmp.lt.s32.totalorder %s22, 1
        %s233 = scalar_select %p232, %s22, 1
        %p234 = scmp.lt.s32.totalorder %s231, 5
        %s235 = scalar_select %p234, %s231, 5
        %s236 = smul.addr %s233, 6
        %s237 = sadd.s32 %s235, %s236
        %s238 = smul.addr %s237, 2
        %s239 = scalar_lea.vmem %s3, %s238
        %p240 = pneg %p127
        %p241 = pneg %p124
        %p242 = pneg %p155
        %p243 = pneg %p152
        %s244 = sand.u32 %s142, 1
        %s245 = scalar_lea.sflag [#allocation4], %s244
        %s246 = sand.u32 %s142, 1
        %s247 = smul.addr %s246, 24
        %s248 = scalar_lea.vmem [#allocation3], %s247
        %s249 = smul.u32 3, %s23
        %p250 = scmp.lt.s32.totalorder %s22, 1
        %s251 = scalar_select %p250, %s22, 1
        %p252 = scmp.lt.s32.totalorder %s249, 5
        %s253 = scalar_select %p252, %s249, 5
        %s254 = smul.addr %s251, 6
        %s255 = sadd.s32 %s253, %s254
        %s256 = smul.addr %s255, 2
        %s257 = scalar_lea.vmem %s2, %s256
        %s258 = smul.u32 3, %s23
        %s259 = sadd.s32 %s23, 1
        %s260 = smul.u32 %s259, 3
        %p261 = scmp.lt.s32.totalorder %s22, 1
        %s262 = scalar_select %p261, %s22, 1
        %p263 = scmp.lt.s32.totalorder %s260, 5
        %s264 = scalar_select %p263, %s260, 5
        %s265 = smul.addr %s262, 6
        %s266 = sadd.s32 %s264, %s265
        %s267 = smul.addr %s266, 2
        %s268 = scalar_lea.vmem %s3, %s267
        %s269 = sadd.s32 %s23, 1
        %s270 = smul.u32 %s269, 3
        %s271 = smul.u32 3, %s23
        %v273 = vld [vmem:[%s257] sm:$0x3f]
        %274 = vst [vmem:[#allocation2] sm:$0x3f] %v273
        %v275 = vld [vmem:[%s268] sm:$0x3]
        %276 = vst [vmem:[#allocation2 + $0x6] sm:$0x3] %v275
        %v277 = vld [vmem:[%s0] sm:$0xf]
        %v278 = vld [vmem:[#allocation2] sm:$0x3f]
        %s279 = scalar_lea.vmem %s0, 4
        %v280 = vld [vmem:[%s279] sm:$0xf]
        %v281 = vld [vmem:[#allocation2] sm:$0xff]
        %v283 = vcombine.high %v281, %v281
        %v285 = vunpack.c.l.s4 1983009808
        %v286 = vunpack.c.0.s8 %v285
        %v287 = vlaneseq
        %v288 = vshrl.u32 %v287, 7
        %v289 = vsub.s32 %v286, %v288
        %v290 = vrot.slane %v281, %v289
        %v292 = vunpack.c.l.s4 1983009808
        %v293 = vunpack.c.0.s8 %v292
        %v294 = vlaneseq
        %v295 = vshrl.u32 %v294, 7
        %v296 = vsub.s32 %v293, %v295
        %v297 = vrot.slane %v283, %v296
        %v298 = vcombine.high %v290, %v290
        %v299 = vcombine.high %v297, %v297
        %300 = vrot.lane.b32.xlu0 %v290, 127
        %v301 = vpop.permute.xlu0 %300
        %302 = vrot.lane.b32.xlu0 %v298, 127
        %v303 = vpop.permute.xlu0 %302
        %304 = vrot.lane.b32.xlu0 %v297, 127
        %v305 = vpop.permute.xlu0 %304
        %306 = vrot.lane.b32.xlu0 %v299, 127
        %v307 = vpop.permute.xlu0 %306
        %vm308 = vcmask 1039360
        %v309 = vsel %vm308, %v301, %v303
        %v310 = vsel %vm308, %v303, %v305
        %v311 = vsel %vm308, %v305, %v307
        %vm312 = vcmask 31744
        %v314 = vsel %vm312, %v280, 0
        %vm316 = vcmask 1041408
        %v318 = vsel %vm316, %v309, 0
        %v321 = vsel %vm316, %v310, 0
        %v324 = vsel %vm316, %v311, 0
        %326 = vmatprep.subr.bf16.mxu0 %v321
        %327 = vmatpush1.bf16.msra.mxu0 %v318
        %328 = vmatprep.subr.bf16.mxu0 0
        %329 = vmatpush1.bf16.msra.mxu0 0
        %330 = vmatprep.subr.bf16.mxu0 0
        %331 = vmatpush1.bf16.msra.mxu0 0
        %332 = vmatprep.subr.bf16.mxu0 0
        %333 = vmatpush1.bf16.msra.mxu0 0
        %334 = vmatprep.subr.bf16.mxu0 0
        %335 = vmatpush1.bf16.msra.mxu0 0
        %336 = vmatprep.subr.bf16.mxu0 0
        %337 = vmatpush1.bf16.msra.mxu0 0
        %338 = vmatprep.subr.bf16.mxu0 0
        %339 = vmatpush1.bf16.msra.mxu0 0
        %340 = vmatprep.subr.bf16.mxu0 0
        %341 = vmatpush1.bf16.msra.mxu0 0
        %342 = vmatprep.subr.bf16.mxu0 0
        %343 = vmatpush1.bf16.msra.mxu0 0
        %344 = vmatprep.subr.bf16.mxu0 0
        %345 = vmatpush1.bf16.msra.mxu0 0
        %346 = vmatprep.subr.bf16.mxu0 0
        %347 = vmatpush1.bf16.msra.mxu0 0
        %348 = vmatprep.subr.bf16.mxu0 0
        %349 = vmatpush1.bf16.msra.mxu0 0
        %350 = vmatprep.subr.bf16.mxu0 0
        %351 = vmatpush1.bf16.msra.mxu0 0
        %352 = vmatprep.subr.bf16.mxu0 0
        %353 = vmatpush1.bf16.msra.mxu0 0
        %354 = vmatprep.subr.bf16.mxu0 0
        %355 = vmatpush1.bf16.msra.mxu0 0
        %356 = vmatprep.subr.bf16.mxu0 0
        %357 = vmatpush1.bf16.msra.mxu0 0
        %358 = vmatprep.mubr.bf16.mxu0 0
        %359 = vmatmul.mubr.bf16.gmra.mrb[0].mxu0 %v314
        %v360 = vpop.f32.mrb[0].mxu0
        %v361 = vadd.f32 0.0, %v360
        %v362 = vpop.f32.mrb[0].mxu0
        %v363 = vadd.f32 0.0, %v362
        %v364 = vpop.f32.mrb[0].mxu0
        %v365 = vpop.f32.mrb[0].mxu0
        %366 = vdwg.mxu0
        %367 = vmatprep.subr.bf16.mxu0 0
        %368 = vmatpush1.bf16.msra.mxu0 %v324
        %369 = vmatprep.subr.bf16.mxu0 0
        %370 = vmatpush1.bf16.msra.mxu0 0
        %371 = vmatprep.subr.bf16.mxu0 0
        %372 = vmatpush1.bf16.msra.mxu0 0
        %373 = vmatprep.subr.bf16.mxu0 0
        %374 = vmatpush1.bf16.msra.mxu0 0
        %375 = vmatprep.subr.bf16.mxu0 0
        %376 = vmatpush1.bf16.msra.mxu0 0
        %377 = vmatprep.subr.bf16.mxu0 0
        %378 = vmatpush1.bf16.msra.mxu0 0
        %379 = vmatprep.subr.bf16.mxu0 0
        %380 = vmatpush1.bf16.msra.mxu0 0
        %381 = vmatprep.subr.bf16.mxu0 0
        %382 = vmatpush1.bf16.msra.mxu0 0
        %383 = vmatprep.subr.bf16.mxu0 0
        %384 = vmatpush1.bf16.msra.mxu0 0
        %385 = vmatprep.subr.bf16.mxu0 0
        %386 = vmatpush1.bf16.msra.mxu0 0
        %387 = vmatprep.subr.bf16.mxu0 0
        %388 = vmatpush1.bf16.msra.mxu0 0
        %389 = vmatprep.subr.bf16.mxu0 0
        %390 = vmatpush1.bf16.msra.mxu0 0
        %391 = vmatprep.subr.bf16.mxu0 0
        %392 = vmatpush1.bf16.msra.mxu0 0
        %393 = vmatprep.subr.bf16.mxu0 0
        %394 = vmatpush1.bf16.msra.mxu0 0
        %395 = vmatprep.subr.bf16.mxu0 0
        %396 = vmatpush1.bf16.msra.mxu0 0
        %397 = vmatprep.subr.bf16.mxu0 0
        %398 = vmatpush1.bf16.msra.mxu0 0
        %399 = vmatprep.mubr.bf16.mxu0 0
        %400 = vmatmul.mubr.bf16.gmra.mrb[0].mxu0 %v314
        %v401 = vpop.f32.mrb[0].mxu0
        %v402 = vadd.f32 0.0, %v401
        %v403 = vpop.f32.mrb[0].mxu0
        %v404 = vpop.f32.mrb[0].mxu0
        %v405 = vpop.f32.mrb[0].mxu0
        %406 = vdwg.mxu0
        %v408 = vcombine.high %v278, %v278
        %v410 = vunpack.c.l.s4 1983009808
        %v411 = vunpack.c.0.s8 %v410
        %v412 = vlaneseq
        %v413 = vshrl.u32 %v412, 7
        %v414 = vsub.s32 %v411, %v413
        %v415 = vrot.slane %v278, %v414
        %v417 = vunpack.c.l.s4 1983009808
        %v418 = vunpack.c.0.s8 %v417
        %v419 = vlaneseq
        %v420 = vshrl.u32 %v419, 7
        %v421 = vsub.s32 %v418, %v420
        %v422 = vrot.slane %v408, %v421
        %v423 = vcombine.high %v415, %v415
        %v425 = vsel %vm312, %v277, 0
        %v428 = vsel %vm316, %v415, 0
        %v431 = vsel %vm316, %v423, 0
        %v434 = vsel %vm316, %v422, 0
        %436 = vmatprep.subr.bf16.mxu0 %v431
        %437 = vmatpush1.bf16.msra.mxu0 %v428
        %438 = vmatprep.subr.bf16.mxu0 0
        %439 = vmatpush1.bf16.msra.mxu0 0
        %440 = vmatprep.subr.bf16.mxu0 0
        %441 = vmatpush1.bf16.msra.mxu0 0
        %442 = vmatprep.subr.bf16.mxu0 0
        %443 = vmatpush1.bf16.msra.mxu0 0
        %444 = vmatprep.subr.bf16.mxu0 0
        %445 = vmatpush1.bf16.msra.mxu0 0
        %446 = vmatprep.subr.bf16.mxu0 0
        %447 = vmatpush1.bf16.msra.mxu0 0
        %448 = vmatprep.subr.bf16.mxu0 0
        %449 = vmatpush1.bf16.msra.mxu0 0
        %450 = vmatprep.subr.bf16.mxu0 0
        %451 = vmatpush1.bf16.msra.mxu0 0
        %452 = vmatprep.subr.bf16.mxu0 0
        %453 = vmatpush1.bf16.msra.mxu0 0
        %454 = vmatprep.subr.bf16.mxu0 0
        %455 = vmatpush1.bf16.msra.mxu0 0
        %456 = vmatprep.subr.bf16.mxu0 0
        %457 = vmatpush1.bf16.msra.mxu0 0
        %458 = vmatprep.subr.bf16.mxu0 0
        %459 = vmatpush1.bf16.msra.mxu0 0
        %460 = vmatprep.subr.bf16.mxu0 0
        %461 = vmatpush1.bf16.msra.mxu0 0
        %462 = vmatprep.subr.bf16.mxu0 0
        %463 = vmatpush1.bf16.msra.mxu0 0
        %464 = vmatprep.subr.bf16.mxu0 0
        %465 = vmatpush1.bf16.msra.mxu0 0
        %466 = vmatprep.subr.bf16.mxu0 0
        %467 = vmatpush1.bf16.msra.mxu0 0
        %468 = vmatprep.mubr.bf16.mxu0 0
        %469 = vmatmul.mubr.bf16.gmra.mrb[0].mxu0 %v425
        %v470 = vpop.f32.mrb[0].mxu0
        %v471 = vadd.f32 %v361, %v470
        %v472 = vpop.f32.mrb[0].mxu0
        %v473 = vadd.f32 %v363, %v472
        %v474 = vpop.f32.mrb[0].mxu0
        %v475 = vpop.f32.mrb[0].mxu0
        %476 = vdwg.mxu0
        %477 = vmatprep.subr.bf16.mxu0 0
        %478 = vmatpush1.bf16.msra.mxu0 %v434
        %479 = vmatprep.subr.bf16.mxu0 0
        %480 = vmatpush1.bf16.msra.mxu0 0
        %481 = vmatprep.subr.bf16.mxu0 0
        %482 = vmatpush1.bf16.msra.mxu0 0
        %483 = vmatprep.subr.bf16.mxu0 0
        %484 = vmatpush1.bf16.msra.mxu0 0
        %485 = vmatprep.subr.bf16.mxu0 0
        %486 = vmatpush1.bf16.msra.mxu0 0
        %487 = vmatprep.subr.bf16.mxu0 0
        %488 = vmatpush1.bf16.msra.mxu0 0
        %489 = vmatprep.subr.bf16.mxu0 0
        %490 = vmatpush1.bf16.msra.mxu0 0
        %491 = vmatprep.subr.bf16.mxu0 0
        %492 = vmatpush1.bf16.msra.mxu0 0
        %493 = vmatprep.subr.bf16.mxu0 0
        %494 = vmatpush1.bf16.msra.mxu0 0
        %495 = vmatprep.subr.bf16.mxu0 0
        %496 = vmatpush1.bf16.msra.mxu0 0
        %497 = vmatprep.subr.bf16.mxu0 0
        %498 = vmatpush1.bf16.msra.mxu0 0
        %499 = vmatprep.subr.bf16.mxu0 0
        %500 = vmatpush1.bf16.msra.mxu0 0
        %501 = vmatprep.subr.bf16.mxu0 0
        %502 = vmatpush1.bf16.msra.mxu0 0
        %503 = vmatprep.subr.bf16.mxu0 0
        %504 = vmatpush1.bf16.msra.mxu0 0
        %505 = vmatprep.subr.bf16.mxu0 0
        %506 = vmatpush1.bf16.msra.mxu0 0
        %507 = vmatprep.subr.bf16.mxu0 0
        %508 = vmatpush1.bf16.msra.mxu0 0
        %509 = vmatprep.mubr.bf16.mxu0 0
        %510 = vmatmul.mubr.bf16.gmra.mrb[0].mxu0 %v425
        %v511 = vpop.f32.mrb[0].mxu0
        %v512 = vadd.f32 %v402, %v511
        %v513 = vpop.f32.mrb[0].mxu0
        %v514 = vpop.f32.mrb[0].mxu0
        %v515 = vpop.f32.mrb[0].mxu0
        %516 = vdwg.mxu0
        %s517 = scalar_lea.vmem %s0, 8
        %v518 = vld [vmem:[%s517] sm:$0xf]
        %v519 = vld [vmem:[#allocation2] sm:$0xff]
        %v521 = vcombine.high %v519, %v519
        %v523 = vunpack.c.l.s4 1983009808
        %v524 = vunpack.c.0.s8 %v523
        %v525 = vlaneseq
        %v526 = vshrl.u32 %v525, 7
        %v527 = vsub.s32 %v524, %v526
        %v528 = vrot.slane %v519, %v527
        %v530 = vunpack.c.l.s4 1983009808
        %v531 = vunpack.c.0.s8 %v530
        %v532 = vlaneseq
        %v533 = vshrl.u32 %v532, 7
        %v534 = vsub.s32 %v531, %v533
        %v535 = vrot.slane %v521, %v534
        %v536 = vcombine.high %v528, %v528
        %v537 = vcombine.high %v535, %v535
        %538 = vrot.lane.b32.xlu0 %v528, 126
        %v539 = vpop.permute.xlu0 %538
        %540 = vrot.lane.b32.xlu0 %v536, 126
        %v541 = vpop.permute.xlu0 %540
        %542 = vrot.lane.b32.xlu0 %v535, 126
        %v543 = vpop.permute.xlu0 %542
        %544 = vrot.lane.b32.xlu0 %v537, 126
        %v545 = vpop.permute.xlu0 %544
        %vm546 = vcmask 1031168
        %v547 = vsel %vm546, %v539, %v541
        %v548 = vsel %vm546, %v541, %v543
        %v549 = vsel %vm546, %v543, %v545
        %v551 = vsel %vm312, %v518, 0
        %v554 = vsel %vm316, %v547, 0
        %v557 = vsel %vm316, %v548, 0
        %v560 = vsel %vm316, %v549, 0
        %562 = vmatprep.subr.bf16.mxu0 %v557
        %563 = vmatpush1.bf16.msra.mxu0 %v554
        %564 = vmatprep.subr.bf16.mxu0 0
        %565 = vmatpush1.bf16.msra.mxu0 0
        %566 = vmatprep.subr.bf16.mxu0 0
        %567 = vmatpush1.bf16.msra.mxu0 0
        %568 = vmatprep.subr.bf16.mxu0 0
        %569 = vmatpush1.bf16.msra.mxu0 0
        %570 = vmatprep.subr.bf16.mxu0 0
        %571 = vmatpush1.bf16.msra.mxu0 0
        %572 = vmatprep.subr.bf16.mxu0 0
        %573 = vmatpush1.bf16.msra.mxu0 0
        %574 = vmatprep.subr.bf16.mxu0 0
        %575 = vmatpush1.bf16.msra.mxu0 0
        %576 = vmatprep.subr.bf16.mxu0 0
        %577 = vmatpush1.bf16.msra.mxu0 0
        %578 = vmatprep.subr.bf16.mxu0 0
        %579 = vmatpush1.bf16.msra.mxu0 0
        %580 = vmatprep.subr.bf16.mxu0 0
        %581 = vmatpush1.bf16.msra.mxu0 0
        %582 = vmatprep.subr.bf16.mxu0 0
        %583 = vmatpush1.bf16.msra.mxu0 0
        %584 = vmatprep.subr.bf16.mxu0 0
        %585 = vmatpush1.bf16.msra.mxu0 0
        %586 = vmatprep.subr.bf16.mxu0 0
        %587 = vmatpush1.bf16.msra.mxu0 0
        %588 = vmatprep.subr.bf16.mxu0 0
        %589 = vmatpush1.bf16.msra.mxu0 0
        %590 = vmatprep.subr.bf16.mxu0 0
        %591 = vmatpush1.bf16.msra.mxu0 0
        %592 = vmatprep.subr.bf16.mxu0 0
        %593 = vmatpush1.bf16.msra.mxu0 0
        %594 = vmatprep.mubr.bf16.mxu0 0
        %595 = vmatmul.mubr.bf16.gmra.mrb[0].mxu0 %v551
        %v596 = vpop.f32.mrb[0].mxu0
        %v597 = vadd.f32 0.0, %v596
        %v598 = vpop.f32.mrb[0].mxu0
        %v599 = vadd.f32 0.0, %v598
        %v600 = vpop.f32.mrb[0].mxu0
        %v601 = vpop.f32.mrb[0].mxu0
        %602 = vdwg.mxu0
        %603 = vmatprep.subr.bf16.mxu0 0
        %604 = vmatpush1.bf16.msra.mxu0 %v560
        %605 = vmatprep.subr.bf16.mxu0 0
        %606 = vmatpush1.bf16.msra.mxu0 0
        %607 = vmatprep.subr.bf16.mxu0 0
        %608 = vmatpush1.bf16.msra.mxu0 0
        %609 = vmatprep.subr.bf16.mxu0 0
        %610 = vmatpush1.bf16.msra.mxu0 0
        %611 = vmatprep.subr.bf16.mxu0 0
        %612 = vmatpush1.bf16.msra.mxu0 0
        %613 = vmatprep.subr.bf16.mxu0 0
        %614 = vmatpush1.bf16.msra.mxu0 0
        %615 = vmatprep.subr.bf16.mxu0 0
        %616 = vmatpush1.bf16.msra.mxu0 0
        %617 = vmatprep.subr.bf16.mxu0 0
        %618 = vmatpush1.bf16.msra.mxu0 0
        %619 = vmatprep.subr.bf16.mxu0 0
        %620 = vmatpush1.bf16.msra.mxu0 0
        %621 = vmatprep.subr.bf16.mxu0 0
        %622 = vmatpush1.bf16.msra.mxu0 0
        %623 = vmatprep.subr.bf16.mxu0 0
        %624 = vmatpush1.bf16.msra.mxu0 0
        %625 = vmatprep.subr.bf16.mxu0 0
        %626 = vmatpush1.bf16.msra.mxu0 0
        %627 = vmatprep.subr.bf16.mxu0 0
        %628 = vmatpush1.bf16.msra.mxu0 0
        %629 = vmatprep.subr.bf16.mxu0 0
        %630 = vmatpush1.bf16.msra.mxu0 0
        %631 = vmatprep.subr.bf16.mxu0 0
        %632 = vmatpush1.bf16.msra.mxu0 0
        %633 = vmatprep.subr.bf16.mxu0 0
        %634 = vmatpush1.bf16.msra.mxu0 0
        %635 = vmatprep.mubr.bf16.mxu0 0
        %636 = vmatmul.mubr.bf16.gmra.mrb[0].mxu0 %v551
        %v637 = vpop.f32.mrb[0].mxu0
        %v638 = vadd.f32 0.0, %v637
        %v639 = vpop.f32.mrb[0].mxu0
        %v640 = vpop.f32.mrb[0].mxu0
        %v641 = vpop.f32.mrb[0].mxu0
        %642 = vdwg.mxu0
        %v643 = vadd.f32 %v471, %v597
        %v644 = vadd.f32 %v473, %v599
        %v645 = vadd.f32 %v512, %v638
        %s646 = scalar_lea.vmem %s0, 12
        %v647 = vld [vmem:[%s646] sm:$0xf]
        %v648 = vld [vmem:[#allocation2] sm:$0xff]
        %v650 = vcombine.high %v648, %v648
        %v652 = vunpack.c.l.s4 1983009808
        %v653 = vunpack.c.0.s8 %v652
        %v654 = vlaneseq
        %v655 = vshrl.u32 %v654, 7
        %v656 = vsub.s32 %v653, %v655
        %v657 = vrot.slane %v648, %v656
        %v659 = vunpack.c.l.s4 1983009808
        %v660 = vunpack.c.0.s8 %v659
        %v661 = vlaneseq
        %v662 = vshrl.u32 %v661, 7
        %v663 = vsub.s32 %v660, %v662
        %v664 = vrot.slane %v650, %v663
        %v665 = vcombine.high %v657, %v657
        %v666 = vcombine.high %v664, %v664
        %667 = vrot.lane.b32.xlu0 %v657, 110
        %v668 = vpop.permute.xlu0 %667
        %669 = vrot.lane.b32.xlu0 %v665, 110
        %v670 = vpop.permute.xlu0 %669
        %671 = vrot.lane.b32.xlu0 %v664, 110
        %v672 = vpop.permute.xlu0 %671
        %673 = vrot.lane.b32.xlu0 %v666, 110
        %v674 = vpop.permute.xlu0 %673
        %vm675 = vcmask 900096
        %v676 = vsel %vm675, %v668, %v670
        %v677 = vsel %vm675, %v670, %v672
        %v678 = vsel %vm675, %v672, %v674
        %v680 = vsel %vm312, %v647, 0
        %v683 = vsel %vm316, %v676, 0
        %v686 = vsel %vm316, %v677, 0
        %v689 = vsel %vm316, %v678, 0
        %691 = vmatprep.subr.bf16.mxu0 %v686
        %692 = vmatpush1.bf16.msra.mxu0 %v683
        %693 = vmatprep.subr.bf16.mxu0 0
        %694 = vmatpush1.bf16.msra.mxu0 0
        %695 = vmatprep.subr.bf16.mxu0 0
        %696 = vmatpush1.bf16.msra.mxu0 0
        %697 = vmatprep.subr.bf16.mxu0 0
        %698 = vmatpush1.bf16.msra.mxu0 0
        %699 = vmatprep.subr.bf16.mxu0 0
        %700 = vmatpush1.bf16.msra.mxu0 0
        %701 = vmatprep.subr.bf16.mxu0 0
        %702 = vmatpush1.bf16.msra.mxu0 0
        %703 = vmatprep.subr.bf16.mxu0 0
        %704 = vmatpush1.bf16.msra.mxu0 0
        %705 = vmatprep.subr.bf16.mxu0 0
        %706 = vmatpush1.bf16.msra.mxu0 0
        %707 = vmatprep.subr.bf16.mxu0 0
        %708 = vmatpush1.bf16.msra.mxu0 0
        %709 = vmatprep.subr.bf16.mxu0 0
        %710 = vmatpush1.bf16.msra.mxu0 0
        %711 = vmatprep.subr.bf16.mxu0 0
        %712 = vmatpush1.bf16.msra.mxu0 0
        %713 = vmatprep.subr.bf16.mxu0 0
        %714 = vmatpush1.bf16.msra.mxu0 0
        %715 = vmatprep.subr.bf16.mxu0 0
        %716 = vmatpush1.bf16.msra.mxu0 0
        %717 = vmatprep.subr.bf16.mxu0 0
        %718 = vmatpush1.bf16.msra.mxu0 0
        %719 = vmatprep.subr.bf16.mxu0 0
        %720 = vmatpush1.bf16.msra.mxu0 0
        %721 = vmatprep.subr.bf16.mxu0 0
        %722 = vmatpush1.bf16.msra.mxu0 0
        %723 = vmatprep.mubr.bf16.mxu0 0
        %724 = vmatmul.mubr.bf16.gmra.mrb[0].mxu0 %v680
        %v725 = vpop.f32.mrb[0].mxu0
        %v726 = vadd.f32 0.0, %v725
        %v727 = vpop.f32.mrb[0].mxu0
        %v728 = vadd.f32 0.0, %v727
        %v729 = vpop.f32.mrb[0].mxu0
        %v730 = vpop.f32.mrb[0].mxu0
        %731 = vdwg.mxu0
        %732 = vmatprep.subr.bf16.mxu0 0
        %733 = vmatpush1.bf16.msra.mxu0 %v689
        %734 = vmatprep.subr.bf16.mxu0 0
        %735 = vmatpush1.bf16.msra.mxu0 0
        %736 = vmatprep.subr.bf16.mxu0 0
        %737 = vmatpush1.bf16.msra.mxu0 0
        %738 = vmatprep.subr.bf16.mxu0 0
        %739 = vmatpush1.bf16.msra.mxu0 0
        %740 = vmatprep.subr.bf16.mxu0 0
        %741 = vmatpush1.bf16.msra.mxu0 0
        %742 = vmatprep.subr.bf16.mxu0 0
        %743 = vmatpush1.bf16.msra.mxu0 0
        %744 = vmatprep.subr.bf16.mxu0 0
        %745 = vmatpush1.bf16.msra.mxu0 0
        %746 = vmatprep.subr.bf16.mxu0 0
        %747 = vmatpush1.bf16.msra.mxu0 0
        %748 = vmatprep.subr.bf16.mxu0 0
        %749 = vmatpush1.bf16.msra.mxu0 0
        %750 = vmatprep.subr.bf16.mxu0 0
        %751 = vmatpush1.bf16.msra.mxu0 0
        %752 = vmatprep.subr.bf16.mxu0 0
        %753 = vmatpush1.bf16.msra.mxu0 0
        %754 = vmatprep.subr.bf16.mxu0 0
        %755 = vmatpush1.bf16.msra.mxu0 0
        %756 = vmatprep.subr.bf16.mxu0 0
        %757 = vmatpush1.bf16.msra.mxu0 0
        %758 = vmatprep.subr.bf16.mxu0 0
        %759 = vmatpush1.bf16.msra.mxu0 0
        %760 = vmatprep.subr.bf16.mxu0 0
        %761 = vmatpush1.bf16.msra.mxu0 0
        %762 = vmatprep.subr.bf16.mxu0 0
        %763 = vmatpush1.bf16.msra.mxu0 0
        %764 = vmatprep.mubr.bf16.mxu0 0
        %765 = vmatmul.mubr.bf16.gmra.mrb[0].mxu0 %v680
        %v766 = vpop.f32.mrb[0].mxu0
        %v767 = vadd.f32 0.0, %v766
        %v768 = vpop.f32.mrb[0].mxu0
        %v769 = vpop.f32.mrb[0].mxu0
        %v770 = vpop.f32.mrb[0].mxu0
        %771 = vdwg.mxu0
        %v772 = vadd.f32 %v643, %v726
        %v773 = vadd.f32 %v644, %v728
        %v774 = vadd.f32 %v645, %v767
        %s775 = scalar_lea.vmem %s0, 16
        %v776 = vld [vmem:[%s775] sm:$0xf]
        %v777 = vld [vmem:[#allocation2] sm:$0xff]
        %v779 = vcombine.high %v777, %v777
        %v781 = vunpack.c.l.s4 1983009808
        %v782 = vunpack.c.0.s8 %v781
        %v783 = vlaneseq
        %v784 = vshrl.u32 %v783, 7
        %v785 = vsub.s32 %v782, %v784
        %v786 = vrot.slane %v777, %v785
        %v788 = vunpack.c.l.s4 1983009808
        %v789 = vunpack.c.0.s8 %v788
        %v790 = vlaneseq
        %v791 = vshrl.u32 %v790, 7
        %v792 = vsub.s32 %v789, %v791
        %v793 = vrot.slane %v779, %v792
        %v794 = vcombine.high %v786, %v786
        %v795 = vcombine.high %v793, %v793
        %796 = vrot.lane.b32.xlu0 %v786, 109
        %v797 = vpop.permute.xlu0 %796
        %798 = vrot.lane.b32.xlu0 %v794, 109
        %v799 = vpop.permute.xlu0 %798
        %800 = vrot.lane.b32.xlu0 %v793, 109
        %v801 = vpop.permute.xlu0 %800
        %802 = vrot.lane.b32.xlu0 %v795, 109
        %v803 = vpop.permute.xlu0 %802
        %vm804 = vcmask 891904
        %v805 = vsel %vm804, %v797, %v799
        %v806 = vsel %vm804, %v799, %v801
        %v807 = vsel %vm804, %v801, %v803
        %v809 = vsel %vm312, %v776, 0
        %v812 = vsel %vm316, %v805, 0
        %v815 = vsel %vm316, %v806, 0
        %v818 = vsel %vm316, %v807, 0
        %820 = vmatprep.subr.bf16.mxu0 %v815
        %821 = vmatpush1.bf16.msra.mxu0 %v812
        %822 = vmatprep.subr.bf16.mxu0 0
        %823 = vmatpush1.bf16.msra.mxu0 0
        %824 = vmatprep.subr.bf16.mxu0 0
        %825 = vmatpush1.bf16.msra.mxu0 0
        %826 = vmatprep.subr.bf16.mxu0 0
        %827 = vmatpush1.bf16.msra.mxu0 0
        %828 = vmatprep.subr.bf16.mxu0 0
        %829 = vmatpush1.bf16.msra.mxu0 0
        %830 = vmatprep.subr.bf16.mxu0 0
        %831 = vmatpush1.bf16.msra.mxu0 0
        %832 = vmatprep.subr.bf16.mxu0 0
        %833 = vmatpush1.bf16.msra.mxu0 0
        %834 = vmatprep.subr.bf16.mxu0 0
        %835 = vmatpush1.bf16.msra.mxu0 0
        %836 = vmatprep.subr.bf16.mxu0 0
        %837 = vmatpush1.bf16.msra.mxu0 0
        %838 = vmatprep.subr.bf16.mxu0 0
        %839 = vmatpush1.bf16.msra.mxu0 0
        %840 = vmatprep.subr.bf16.mxu0 0
        %841 = vmatpush1.bf16.msra.mxu0 0
        %842 = vmatprep.subr.bf16.mxu0 0
        %843 = vmatpush1.bf16.msra.mxu0 0
        %844 = vmatprep.subr.bf16.mxu0 0
        %845 = vmatpush1.bf16.msra.mxu0 0
        %846 = vmatprep.subr.bf16.mxu0 0
        %847 = vmatpush1.bf16.msra.mxu0 0
        %848 = vmatprep.subr.bf16.mxu0 0
        %849 = vmatpush1.bf16.msra.mxu0 0
        %850 = vmatprep.subr.bf16.mxu0 0
        %851 = vmatpush1.bf16.msra.mxu0 0
        %852 = vmatprep.mubr.bf16.mxu0 0
        %853 = vmatmul.mubr.bf16.gmra.mrb[0].mxu0 %v809
        %v854 = vpop.f32.mrb[0].mxu0
        %v855 = vadd.f32 0.0, %v854
        %v856 = vpop.f32.mrb[0].mxu0
        %v857 = vadd.f32 0.0, %v856
        %v858 = vpop.f32.mrb[0].mxu0
        %v859 = vpop.f32.mrb[0].mxu0
        %860 = vdwg.mxu0
        %861 = vmatprep.subr.bf16.mxu0 0
        %862 = vmatpush1.bf16.msra.mxu0 %v818
        %863 = vmatprep.subr.bf16.mxu0 0
        %864 = vmatpush1.bf16.msra.mxu0 0
        %865 = vmatprep.subr.bf16.mxu0 0
        %866 = vmatpush1.bf16.msra.mxu0 0
        %867 = vmatprep.subr.bf16.mxu0 0
        %868 = vmatpush1.bf16.msra.mxu0 0
        %869 = vmatprep.subr.bf16.mxu0 0
        %870 = vmatpush1.bf16.msra.mxu0 0
        %871 = vmatprep.subr.bf16.mxu0 0
        %872 = vmatpush1.bf16.msra.mxu0 0
        %873 = vmatprep.subr.bf16.mxu0 0
        %874 = vmatpush1.bf16.msra.mxu0 0
        %875 = vmatprep.subr.bf16.mxu0 0
        %876 = vmatpush1.bf16.msra.mxu0 0
        %877 = vmatprep.subr.bf16.mxu0 0
        %878 = vmatpush1.bf16.msra.mxu0 0
        %879 = vmatprep.subr.bf16.mxu0 0
        %880 = vmatpush1.bf16.msra.mxu0 0
        %881 = vmatprep.subr.bf16.mxu0 0
        %882 = vmatpush1.bf16.msra.mxu0 0
        %883 = vmatprep.subr.bf16.mxu0 0
        %884 = vmatpush1.bf16.msra.mxu0 0
        %885 = vmatprep.subr.bf16.mxu0 0
        %886 = vmatpush1.bf16.msra.mxu0 0
        %887 = vmatprep.subr.bf16.mxu0 0
        %888 = vmatpush1.bf16.msra.mxu0 0
        %889 = vmatprep.subr.bf16.mxu0 0
        %890 = vmatpush1.bf16.msra.mxu0 0
        %891 = vmatprep.subr.bf16.mxu0 0
        %892 = vmatpush1.bf16.msra.mxu0 0
        %893 = vmatprep.mubr.bf16.mxu0 0
        %894 = vmatmul.mubr.bf16.gmra.mrb[0].mxu0 %v809
        %v895 = vpop.f32.mrb[0].mxu0
        %v896 = vadd.f32 0.0, %v895
        %v897 = vpop.f32.mrb[0].mxu0
        %v898 = vpop.f32.mrb[0].mxu0
        %v899 = vpop.f32.mrb[0].mxu0
        %900 = vdwg.mxu0
        %v901 = vadd.f32 %v772, %v855
        %v902 = vadd.f32 %v773, %v857
        %v903 = vadd.f32 %v774, %v896
        %s904 = scalar_lea.vmem %s0, 20
        %v905 = vld [vmem:[%s904] sm:$0xf]
        %v906 = vld [vmem:[#allocation2] sm:$0xff]
        %v908 = vcombine.high %v906, %v906
        %v910 = vunpack.c.l.s4 1983009808
        %v911 = vunpack.c.0.s8 %v910
        %v912 = vlaneseq
        %v913 = vshrl.u32 %v912, 7
        %v914 = vsub.s32 %v911, %v913
        %v915 = vrot.slane %v906, %v914
        %v917 = vunpack.c.l.s4 1983009808
        %v918 = vunpack.c.0.s8 %v917
        %v919 = vlaneseq
        %v920 = vshrl.u32 %v919, 7
        %v921 = vsub.s32 %v918, %v920
        %v922 = vrot.slane %v908, %v921
        %v923 = vcombine.high %v915, %v915
        %v924 = vcombine.high %v922, %v922
        %925 = vrot.lane.b32.xlu0 %v915, 108
        %v926 = vpop.permute.xlu0 %925
        %927 = vrot.lane.b32.xlu0 %v923, 108
        %v928 = vpop.permute.xlu0 %927
        %929 = vrot.lane.b32.xlu0 %v922, 108
        %v930 = vpop.permute.xlu0 %929
        %931 = vrot.lane.b32.xlu0 %v924, 108
        %v932 = vpop.permute.xlu0 %931
        %vm933 = vcmask 883712
        %v934 = vsel %vm933, %v926, %v928
        %v935 = vsel %vm933, %v928, %v930
        %v936 = vsel %vm933, %v930, %v932
        %v938 = vsel %vm312, %v905, 0
        %v941 = vsel %vm316, %v934, 0
        %v944 = vsel %vm316, %v935, 0
        %v947 = vsel %vm316, %v936, 0
        %949 = vmatprep.subr.bf16.mxu0 %v944
        %950 = vmatpush1.bf16.msra.mxu0 %v941
        %951 = vmatprep.subr.bf16.mxu0 0
        %952 = vmatpush1.bf16.msra.mxu0 0
        %953 = vmatprep.subr.bf16.mxu0 0
        %954 = vmatpush1.bf16.msra.mxu0 0
        %955 = vmatprep.subr.bf16.mxu0 0
        %956 = vmatpush1.bf16.msra.mxu0 0
        %957 = vmatprep.subr.bf16.mxu0 0
        %958 = vmatpush1.bf16.msra.mxu0 0
        %959 = vmatprep.subr.bf16.mxu0 0
        %960 = vmatpush1.bf16.msra.mxu0 0
        %961 = vmatprep.subr.bf16.mxu0 0
        %962 = vmatpush1.bf16.msra.mxu0 0
        %963 = vmatprep.subr.bf16.mxu0 0
        %964 = vmatpush1.bf16.msra.mxu0 0
        %965 = vmatprep.subr.bf16.mxu0 0
        %966 = vmatpush1.bf16.msra.mxu0 0
        %967 = vmatprep.subr.bf16.mxu0 0
        %968 = vmatpush1.bf16.msra.mxu0 0
        %969 = vmatprep.subr.bf16.mxu0 0
        %970 = vmatpush1.bf16.msra.mxu0 0
        %971 = vmatprep.subr.bf16.mxu0 0
        %972 = vmatpush1.bf16.msra.mxu0 0
        %973 = vmatprep.subr.bf16.mxu0 0
        %974 = vmatpush1.bf16.msra.mxu0 0
        %975 = vmatprep.subr.bf16.mxu0 0
        %976 = vmatpush1.bf16.msra.mxu0 0
        %977 = vmatprep.subr.bf16.mxu0 0
        %978 = vmatpush1.bf16.msra.mxu0 0
        %979 = vmatprep.subr.bf16.mxu0 0
        %980 = vmatpush1.bf16.msra.mxu0 0
        %981 = vmatprep.mubr.bf16.mxu0 0
        %982 = vmatmul.mubr.bf16.gmra.mrb[0].mxu0 %v938
        %v983 = vpop.f32.mrb[0].mxu0
        %v984 = vadd.f32 0.0, %v983
        %v985 = vpop.f32.mrb[0].mxu0
        %v986 = vadd.f32 0.0, %v985
        %v987 = vpop.f32.mrb[0].mxu0
        %v988 = vpop.f32.mrb[0].mxu0
        %989 = vdwg.mxu0
        %990 = vmatprep.subr.bf16.mxu0 0
        %991 = vmatpush1.bf16.msra.mxu0 %v947
        %992 = vmatprep.subr.bf16.mxu0 0
        %993 = vmatpush1.bf16.msra.mxu0 0
        %994 = vmatprep.subr.bf16.mxu0 0
        %995 = vmatpush1.bf16.msra.mxu0 0
        %996 = vmatprep.subr.bf16.mxu0 0
        %997 = vmatpush1.bf16.msra.mxu0 0
        %998 = vmatprep.subr.bf16.mxu0 0
        %999 = vmatpush1.bf16.msra.mxu0 0
        %1000 = vmatprep.subr.bf16.mxu0 0
        %1001 = vmatpush1.bf16.msra.mxu0 0
        %1002 = vmatprep.subr.bf16.mxu0 0
        %1003 = vmatpush1.bf16.msra.mxu0 0
        %1004 = vmatprep.subr.bf16.mxu0 0
        %1005 = vmatpush1.bf16.msra.mxu0 0
        %1006 = vmatprep.subr.bf16.mxu0 0
        %1007 = vmatpush1.bf16.msra.mxu0 0
        %1008 = vmatprep.subr.bf16.mxu0 0
        %1009 = vmatpush1.bf16.msra.mxu0 0
        %1010 = vmatprep.subr.bf16.mxu0 0
        %1011 = vmatpush1.bf16.msra.mxu0 0
        %1012 = vmatprep.subr.bf16.mxu0 0
        %1013 = vmatpush1.bf16.msra.mxu0 0
        %1014 = vmatprep.subr.bf16.mxu0 0
        %1015 = vmatpush1.bf16.msra.mxu0 0
        %1016 = vmatprep.subr.bf16.mxu0 0
        %1017 = vmatpush1.bf16.msra.mxu0 0
        %1018 = vmatprep.subr.bf16.mxu0 0
        %1019 = vmatpush1.bf16.msra.mxu0 0
        %1020 = vmatprep.subr.bf16.mxu0 0
        %1021 = vmatpush1.bf16.msra.mxu0 0
        %1022 = vmatprep.mubr.bf16.mxu0 0
        %1023 = vmatmul.mubr.bf16.gmra.mrb[0].mxu0 %v938
        %v1024 = vpop.f32.mrb[0].mxu0
        %v1025 = vadd.f32 0.0, %v1024
        %v1026 = vpop.f32.mrb[0].mxu0
        %v1027 = vpop.f32.mrb[0].mxu0
        %v1028 = vpop.f32.mrb[0].mxu0
        %1029 = vdwg.mxu0
        %v1030 = vadd.f32 %v901, %v984
        %v1031 = vadd.f32 %v902, %v986
        %v1032 = vadd.f32 %v903, %v1025
        %s1033 = scalar_lea.vmem %s0, 24
        %v1034 = vld [vmem:[%s1033] sm:$0xf]
        %v1035 = vld [vmem:[#allocation2] sm:$0xff]
        %v1037 = vcombine.high %v1035, %v1035
        %v1039 = vunpack.c.l.s4 1983009808
        %v1040 = vunpack.c.0.s8 %v1039
        %v1041 = vlaneseq
        %v1042 = vshrl.u32 %v1041, 7
        %v1043 = vsub.s32 %v1040, %v1042
        %v1044 = vrot.slane %v1035, %v1043
        %v1046 = vunpack.c.l.s4 1983009808
        %v1047 = vunpack.c.0.s8 %v1046
        %v1048 = vlaneseq
        %v1049 = vshrl.u32 %v1048, 7
        %v1050 = vsub.s32 %v1047, %v1049
        %v1051 = vrot.slane %v1037, %v1050
        %v1052 = vcombine.high %v1044, %v1044
        %v1053 = vcombine.high %v1051, %v1051
        %1054 = vrot.lane.b32.xlu0 %v1044, 92
        %v1055 = vpop.permute.xlu0 %1054
        %1056 = vrot.lane.b32.xlu0 %v1052, 92
        %v1057 = vpop.permute.xlu0 %1056
        %1058 = vrot.lane.b32.xlu0 %v1051, 92
        %v1059 = vpop.permute.xlu0 %1058
        %1060 = vrot.lane.b32.xlu0 %v1053, 92
        %v1061 = vpop.permute.xlu0 %1060
        %vm1062 = vcmask 752640
        %v1063 = vsel %vm1062, %v1055, %v1057
        %v1064 = vsel %vm1062, %v1057, %v1059
        %v1065 = vsel %vm1062, %v1059, %v1061
        %v1067 = vsel %vm312, %v1034, 0
        %v1070 = vsel %vm316, %v1063, 0
        %v1073 = vsel %vm316, %v1064, 0
        %v1076 = vsel %vm316, %v1065, 0
        %1078 = vmatprep.subr.bf16.mxu0 %v1073
        %1079 = vmatpush1.bf16.msra.mxu0 %v1070
        %1080 = vmatprep.subr.bf16.mxu0 0
        %1081 = vmatpush1.bf16.msra.mxu0 0
        %1082 = vmatprep.subr.bf16.mxu0 0
        %1083 = vmatpush1.bf16.msra.mxu0 0
        %1084 = vmatprep.subr.bf16.mxu0 0
        %1085 = vmatpush1.bf16.msra.mxu0 0
        %1086 = vmatprep.subr.bf16.mxu0 0
        %1087 = vmatpush1.bf16.msra.mxu0 0
        %1088 = vmatprep.subr.bf16.mxu0 0
        %1089 = vmatpush1.bf16.msra.mxu0 0
        %1090 = vmatprep.subr.bf16.mxu0 0
        %1091 = vmatpush1.bf16.msra.mxu0 0
        %1092 = vmatprep.subr.bf16.mxu0 0
        %1093 = vmatpush1.bf16.msra.mxu0 0
        %1094 = vmatprep.subr.bf16.mxu0 0
        %1095 = vmatpush1.bf16.msra.mxu0 0
        %1096 = vmatprep.subr.bf16.mxu0 0
        %1097 = vmatpush1.bf16.msra.mxu0 0
        %1098 = vmatprep.subr.bf16.mxu0 0
        %1099 = vmatpush1.bf16.msra.mxu0 0
        %1100 = vmatprep.subr.bf16.mxu0 0
        %1101 = vmatpush1.bf16.msra.mxu0 0
        %1102 = vmatprep.subr.bf16.mxu0 0
        %1103 = vmatpush1.bf16.msra.mxu0 0
        %1104 = vmatprep.subr.bf16.mxu0 0
        %1105 = vmatpush1.bf16.msra.mxu0 0
        %1106 = vmatprep.subr.bf16.mxu0 0
        %1107 = vmatpush1.bf16.msra.mxu0 0
        %1108 = vmatprep.subr.bf16.mxu0 0
        %1109 = vmatpush1.bf16.msra.mxu0 0
        %1110 = vmatprep.mubr.bf16.mxu0 0
        %1111 = vmatmul.mubr.bf16.gmra.mrb[0].mxu0 %v1067
        %v1112 = vpop.f32.mrb[0].mxu0
        %v1113 = vadd.f32 0.0, %v1112
        %v1114 = vpop.f32.mrb[0].mxu0
        %v1115 = vadd.f32 0.0, %v1114
        %v1116 = vpop.f32.mrb[0].mxu0
        %v1117 = vpop.f32.mrb[0].mxu0
        %1118 = vdwg.mxu0
        %1119 = vmatprep.subr.bf16.mxu0 0
        %1120 = vmatpush1.bf16.msra.mxu0 %v1076
        %1121 = vmatprep.subr.bf16.mxu0 0
        %1122 = vmatpush1.bf16.msra.mxu0 0
        %1123 = vmatprep.subr.bf16.mxu0 0
        %1124 = vmatpush1.bf16.msra.mxu0 0
        %1125 = vmatprep.subr.bf16.mxu0 0
        %1126 = vmatpush1.bf16.msra.mxu0 0
        %1127 = vmatprep.subr.bf16.mxu0 0
        %1128 = vmatpush1.bf16.msra.mxu0 0
        %1129 = vmatprep.subr.bf16.mxu0 0
        %1130 = vmatpush1.bf16.msra.mxu0 0
        %1131 = vmatprep.subr.bf16.mxu0 0
        %1132 = vmatpush1.bf16.msra.mxu0 0
        %1133 = vmatprep.subr.bf16.mxu0 0
        %1134 = vmatpush1.bf16.msra.mxu0 0
        %1135 = vmatprep.subr.bf16.mxu0 0
        %1136 = vmatpush1.bf16.msra.mxu0 0
        %1137 = vmatprep.subr.bf16.mxu0 0
        %1138 = vmatpush1.bf16.msra.mxu0 0
        %1139 = vmatprep.subr.bf16.mxu0 0
        %1140 = vmatpush1.bf16.msra.mxu0 0
        %1141 = vmatprep.subr.bf16.mxu0 0
        %1142 = vmatpush1.bf16.msra.mxu0 0
        %1143 = vmatprep.subr.bf16.mxu0 0
        %1144 = vmatpush1.bf16.msra.mxu0 0
        %1145 = vmatprep.subr.bf16.mxu0 0
        %1146 = vmatpush1.bf16.msra.mxu0 0
        %1147 = vmatprep.subr.bf16.mxu0 0
        %1148 = vmatpush1.bf16.msra.mxu0 0
        %1149 = vmatprep.subr.bf16.mxu0 0
        %1150 = vmatpush1.bf16.msra.mxu0 0
        %1151 = vmatprep.mubr.bf16.mxu0 0
        %1152 = vmatmul.mubr.bf16.gmra.mrb[0].mxu0 %v1067
        %v1153 = vpop.f32.mrb[0].mxu0
        %v1154 = vadd.f32 0.0, %v1153
        %v1155 = vpop.f32.mrb[0].mxu0
        %v1156 = vpop.f32.mrb[0].mxu0
        %v1157 = vpop.f32.mrb[0].mxu0
        %1158 = vdwg.mxu0
        %v1159 = vadd.f32 %v1030, %v1113
        %v1160 = vadd.f32 %v1031, %v1115
        %v1161 = vadd.f32 %v1032, %v1154
        %s1162 = scalar_lea.vmem %s0, 28
        %v1163 = vld [vmem:[%s1162] sm:$0xf]
        %v1164 = vld [vmem:[#allocation2] sm:$0xff]
        %v1166 = vcombine.high %v1164, %v1164
        %v1168 = vunpack.c.l.s4 1983009808
        %v1169 = vunpack.c.0.s8 %v1168
        %v1170 = vlaneseq
        %v1171 = vshrl.u32 %v1170, 7
        %v1172 = vsub.s32 %v1169, %v1171
        %v1173 = vrot.slane %v1164, %v1172
        %v1175 = vunpack.c.l.s4 1983009808
        %v1176 = vunpack.c.0.s8 %v1175
        %v1177 = vlaneseq
        %v1178 = vshrl.u32 %v1177, 7
        %v1179 = vsub.s32 %v1176, %v1178
        %v1180 = vrot.slane %v1166, %v1179
        %v1181 = vcombine.high %v1173, %v1173
        %v1182 = vcombine.high %v1180, %v1180
        %1183 = vrot.lane.b32.xlu0 %v1173, 91
        %v1184 = vpop.permute.xlu0 %1183
        %1185 = vrot.lane.b32.xlu0 %v1181, 91
        %v1186 = vpop.permute.xlu0 %1185
        %1187 = vrot.lane.b32.xlu0 %v1180, 91
        %v1188 = vpop.permute.xlu0 %1187
        %1189 = vrot.lane.b32.xlu0 %v1182, 91
        %v1190 = vpop.permute.xlu0 %1189
        %vm1191 = vcmask 744448
        %v1192 = vsel %vm1191, %v1184, %v1186
        %v1193 = vsel %vm1191, %v1186, %v1188
        %v1194 = vsel %vm1191, %v1188, %v1190
        %v1196 = vsel %vm312, %v1163, 0
        %v1199 = vsel %vm316, %v1192, 0
        %v1202 = vsel %vm316, %v1193, 0
        %v1205 = vsel %vm316, %v1194, 0
        %1207 = vmatprep.subr.bf16.mxu0 %v1202
        %1208 = vmatpush1.bf16.msra.mxu0 %v1199
        %1209 = vmatprep.subr.bf16.mxu0 0
        %1210 = vmatpush1.bf16.msra.mxu0 0
        %1211 = vmatprep.subr.bf16.mxu0 0
        %1212 = vmatpush1.bf16.msra.mxu0 0
        %1213 = vmatprep.subr.bf16.mxu0 0
        %1214 = vmatpush1.bf16.msra.mxu0 0
        %1215 = vmatprep.subr.bf16.mxu0 0
        %1216 = vmatpush1.bf16.msra.mxu0 0
        %1217 = vmatprep.subr.bf16.mxu0 0
        %1218 = vmatpush1.bf16.msra.mxu0 0
        %1219 = vmatprep.subr.bf16.mxu0 0
        %1220 = vmatpush1.bf16.msra.mxu0 0
        %1221 = vmatprep.subr.bf16.mxu0 0
        %1222 = vmatpush1.bf16.msra.mxu0 0
        %1223 = vmatprep.subr.bf16.mxu0 0
        %1224 = vmatpush1.bf16.msra.mxu0 0
        %1225 = vmatprep.subr.bf16.mxu0 0
        %1226 = vmatpush1.bf16.msra.mxu0 0
        %1227 = vmatprep.subr.bf16.mxu0 0
        %1228 = vmatpush1.bf16.msra.mxu0 0
        %1229 = vmatprep.subr.bf16.mxu0 0
        %1230 = vmatpush1.bf16.msra.mxu0 0
        %1231 = vmatprep.subr.bf16.mxu0 0
        %1232 = vmatpush1.bf16.msra.mxu0 0
        %1233 = vmatprep.subr.bf16.mxu0 0
        %1234 = vmatpush1.bf16.msra.mxu0 0
        %1235 = vmatprep.subr.bf16.mxu0 0
        %1236 = vmatpush1.bf16.msra.mxu0 0
        %1237 = vmatprep.subr.bf16.mxu0 0
        %1238 = vmatpush1.bf16.msra.mxu0 0
        %1239 = vmatprep.mubr.bf16.mxu0 0
        %1240 = vmatmul.mubr.bf16.gmra.mrb[0].mxu0 %v1196
        %v1241 = vpop.f32.mrb[0].mxu0
        %v1242 = vadd.f32 0.0, %v1241
        %v1243 = vpop.f32.mrb[0].mxu0
        %v1244 = vadd.f32 0.0, %v1243
        %v1245 = vpop.f32.mrb[0].mxu0
        %v1246 = vpop.f32.mrb[0].mxu0
        %1247 = vdwg.mxu0
        %1248 = vmatprep.subr.bf16.mxu0 0
        %1249 = vmatpush1.bf16.msra.mxu0 %v1205
        %1250 = vmatprep.subr.bf16.mxu0 0
        %1251 = vmatpush1.bf16.msra.mxu0 0
        %1252 = vmatprep.subr.bf16.mxu0 0
        %1253 = vmatpush1.bf16.msra.mxu0 0
        %1254 = vmatprep.subr.bf16.mxu0 0
        %1255 = vmatpush1.bf16.msra.mxu0 0
        %1256 = vmatprep.subr.bf16.mxu0 0
        %1257 = vmatpush1.bf16.msra.mxu0 0
        %1258 = vmatprep.subr.bf16.mxu0 0
        %1259 = vmatpush1.bf16.msra.mxu0 0
        %1260 = vmatprep.subr.bf16.mxu0 0
        %1261 = vmatpush1.bf16.msra.mxu0 0
        %1262 = vmatprep.subr.bf16.mxu0 0
        %1263 = vmatpush1.bf16.msra.mxu0 0
        %1264 = vmatprep.subr.bf16.mxu0 0
        %1265 = vmatpush1.bf16.msra.mxu0 0
        %1266 = vmatprep.subr.bf16.mxu0 0
        %1267 = vmatpush1.bf16.msra.mxu0 0
        %1268 = vmatprep.subr.bf16.mxu0 0
        %1269 = vmatpush1.bf16.msra.mxu0 0
        %1270 = vmatprep.subr.bf16.mxu0 0
        %1271 = vmatpush1.bf16.msra.mxu0 0
        %1272 = vmatprep.subr.bf16.mxu0 0
        %1273 = vmatpush1.bf16.msra.mxu0 0
        %1274 = vmatprep.subr.bf16.mxu0 0
        %1275 = vmatpush1.bf16.msra.mxu0 0
        %1276 = vmatprep.subr.bf16.mxu0 0
        %1277 = vmatpush1.bf16.msra.mxu0 0
        %1278 = vmatprep.subr.bf16.mxu0 0
        %1279 = vmatpush1.bf16.msra.mxu0 0
        %1280 = vmatprep.mubr.bf16.mxu0 0
        %1281 = vmatmul.mubr.bf16.gmra.mrb[0].mxu0 %v1196
        %v1282 = vpop.f32.mrb[0].mxu0
        %v1283 = vadd.f32 0.0, %v1282
        %v1284 = vpop.f32.mrb[0].mxu0
        %v1285 = vpop.f32.mrb[0].mxu0
        %v1286 = vpop.f32.mrb[0].mxu0
        %1287 = vdwg.mxu0
        %v1288 = vadd.f32 %v1159, %v1242
        %v1289 = vadd.f32 %v1160, %v1244
        %v1290 = vadd.f32 %v1161, %v1283
        %s1291 = scalar_lea.vmem %s0, 32
        %v1292 = vld [vmem:[%s1291] sm:$0xf]
        %v1293 = vld [vmem:[#allocation2] sm:$0xff]
        %v1295 = vcombine.high %v1293, %v1293
        %v1297 = vunpack.c.l.s4 1983009808
        %v1298 = vunpack.c.0.s8 %v1297
        %v1299 = vlaneseq
        %v1300 = vshrl.u32 %v1299, 7
        %v1301 = vsub.s32 %v1298, %v1300
        %v1302 = vrot.slane %v1293, %v1301
        %v1304 = vunpack.c.l.s4 1983009808
        %v1305 = vunpack.c.0.s8 %v1304
        %v1306 = vlaneseq
        %v1307 = vshrl.u32 %v1306, 7
        %v1308 = vsub.s32 %v1305, %v1307
        %v1309 = vrot.slane %v1295, %v1308
        %v1310 = vcombine.high %v1302, %v1302
        %v1311 = vcombine.high %v1309, %v1309
        %1312 = vrot.lane.b32.xlu0 %v1302, 90
        %v1313 = vpop.permute.xlu0 %1312
        %1314 = vrot.lane.b32.xlu0 %v1310, 90
        %v1315 = vpop.permute.xlu0 %1314
        %1316 = vrot.lane.b32.xlu0 %v1309, 90
        %v1317 = vpop.permute.xlu0 %1316
        %1318 = vrot.lane.b32.xlu0 %v1311, 90
        %v1319 = vpop.permute.xlu0 %1318
        %vm1320 = vcmask 736256
        %v1321 = vsel %vm1320, %v1313, %v1315
        %v1322 = vsel %vm1320, %v1315, %v1317
        %v1323 = vsel %vm1320, %v1317, %v1319
        %v1325 = vsel %vm312, %v1292, 0
        %v1328 = vsel %vm316, %v1321, 0
        %v1331 = vsel %vm316, %v1322, 0
        %v1334 = vsel %vm316, %v1323, 0
        %1336 = vmatprep.subr.bf16.mxu0 %v1331
        %1337 = vmatpush1.bf16.msra.mxu0 %v1328
        %1338 = vmatprep.subr.bf16.mxu0 0
        %1339 = vmatpush1.bf16.msra.mxu0 0
        %1340 = vmatprep.subr.bf16.mxu0 0
        %1341 = vmatpush1.bf16.msra.mxu0 0
        %1342 = vmatprep.subr.bf16.mxu0 0
        %1343 = vmatpush1.bf16.msra.mxu0 0
        %1344 = vmatprep.subr.bf16.mxu0 0
        %1345 = vmatpush1.bf16.msra.mxu0 0
        %1346 = vmatprep.subr.bf16.mxu0 0
        %1347 = vmatpush1.bf16.msra.mxu0 0
        %1348 = vmatprep.subr.bf16.mxu0 0
        %1349 = vmatpush1.bf16.msra.mxu0 0
        %1350 = vmatprep.subr.bf16.mxu0 0
        %1351 = vmatpush1.bf16.msra.mxu0 0
        %1352 = vmatprep.subr.bf16.mxu0 0
        %1353 = vmatpush1.bf16.msra.mxu0 0
        %1354 = vmatprep.subr.bf16.mxu0 0
        %1355 = vmatpush1.bf16.msra.mxu0 0
        %1356 = vmatprep.subr.bf16.mxu0 0
        %1357 = vmatpush1.bf16.msra.mxu0 0
        %1358 = vmatprep.subr.bf16.mxu0 0
        %1359 = vmatpush1.bf16.msra.mxu0 0
        %1360 = vmatprep.subr.bf16.mxu0 0
        %1361 = vmatpush1.bf16.msra.mxu0 0
        %1362 = vmatprep.subr.bf16.mxu0 0
        %1363 = vmatpush1.bf16.msra.mxu0 0
        %1364 = vmatprep.subr.bf16.mxu0 0
        %1365 = vmatpush1.bf16.msra.mxu0 0
        %1366 = vmatprep.subr.bf16.mxu0 0
        %1367 = vmatpush1.bf16.msra.mxu0 0
        %1368 = vmatprep.mubr.bf16.mxu0 0
        %1369 = vmatmul.mubr.bf16.gmra.mrb[0].mxu0 %v1325
        %v1370 = vpop.f32.mrb[0].mxu0
        %v1371 = vadd.f32 0.0, %v1370
        %v1372 = vpop.f32.mrb[0].mxu0
        %v1373 = vadd.f32 0.0, %v1372
        %v1374 = vpop.f32.mrb[0].mxu0
        %v1375 = vpop.f32.mrb[0].mxu0
        %1376 = vdwg.mxu0
        %1377 = vmatprep.subr.bf16.mxu0 0
        %1378 = vmatpush1.bf16.msra.mxu0 %v1334
        %1379 = vmatprep.subr.bf16.mxu0 0
        %1380 = vmatpush1.bf16.msra.mxu0 0
        %1381 = vmatprep.subr.bf16.mxu0 0
        %1382 = vmatpush1.bf16.msra.mxu0 0
        %1383 = vmatprep.subr.bf16.mxu0 0
        %1384 = vmatpush1.bf16.msra.mxu0 0
        %1385 = vmatprep.subr.bf16.mxu0 0
        %1386 = vmatpush1.bf16.msra.mxu0 0
        %1387 = vmatprep.subr.bf16.mxu0 0
        %1388 = vmatpush1.bf16.msra.mxu0 0
        %1389 = vmatprep.subr.bf16.mxu0 0
        %1390 = vmatpush1.bf16.msra.mxu0 0
        %1391 = vmatprep.subr.bf16.mxu0 0
        %1392 = vmatpush1.bf16.msra.mxu0 0
        %1393 = vmatprep.subr.bf16.mxu0 0
        %1394 = vmatpush1.bf16.msra.mxu0 0
        %1395 = vmatprep.subr.bf16.mxu0 0
        %1396 = vmatpush1.bf16.msra.mxu0 0
        %1397 = vmatprep.subr.bf16.mxu0 0
        %1398 = vmatpush1.bf16.msra.mxu0 0
        %1399 = vmatprep.subr.bf16.mxu0 0
        %1400 = vmatpush1.bf16.msra.mxu0 0
        %1401 = vmatprep.subr.bf16.mxu0 0
        %1402 = vmatpush1.bf16.msra.mxu0 0
        %1403 = vmatprep.subr.bf16.mxu0 0
        %1404 = vmatpush1.bf16.msra.mxu0 0
        %1405 = vmatprep.subr.bf16.mxu0 0
        %1406 = vmatpush1.bf16.msra.mxu0 0
        %1407 = vmatprep.subr.bf16.mxu0 0
        %1408 = vmatpush1.bf16.msra.mxu0 0
        %1409 = vmatprep.mubr.bf16.mxu0 0
        %1410 = vmatmul.mubr.bf16.gmra.mrb[0].mxu0 %v1325
        %v1411 = vpop.f32.mrb[0].mxu0
        %v1412 = vadd.f32 0.0, %v1411
        %v1413 = vpop.f32.mrb[0].mxu0
        %v1414 = vpop.f32.mrb[0].mxu0
        %v1415 = vpop.f32.mrb[0].mxu0
        %1416 = vdwg.mxu0
        %v1417 = vadd.f32 %v1288, %v1371
        %v1418 = vadd.f32 %v1289, %v1373
        %v1419 = vadd.f32 %v1290, %v1412
        %v1420 = vld [vmem:[%s1] sm:$0xff]
        %1422 = vset.pattern.permute.xlu0 0
        %1423 = vperm.xlu0 %1422, %v1420
        %v1424 = vpop.permute.xlu0 %1423
        %v1426 = vadd.f32 %v1417, %v1424
        %v1427 = vadd.f32 %v1418, %v1424
        %v1428 = vadd.f32 %v1419, %v1424
        %1429 = vst [vmem:[%s248] sm:$0xff] %v1426
        %1430 = vst [vmem:[%s248 + $0x8] sm:$0xff] %v1427
        %1431 = vst [vmem:[%s248 + $0x10] sm:$0xff] %v1428
        %s1432 = sand.u32 %s142, 1
        %s1433 = scalar_lea.sflag [#allocation4], %s1432
        %s1434 = sand.u32 %s142, 1
        %s1435 = smul.addr %s1434, 24
        %s1436 = scalar_lea.vmem [#allocation3], %s1435
        // Predicated region
        $region37: #{tpu_custom_call.1} parent=35 // pred_check
          %p1437 = pneg %p152
        $region38: #{tpu_custom_call.1} parent=35 // pred_check_branch
          %1439 = sbr.rel (%p1437) target = $region40
        $region39: #{tpu_custom_call.1} parent=35 // pred_region
          %s1440 = smul.u32 3, %s23
          %s1442 = ssub.s32 384, 384
          %1443 = vsyncadd %s1433, %s1442
          %s1444 = smul.addr %s22, 3
          %s1445 = sadd.s32 %s1440, %s1444
          %s1446 = smul.addr %s1445, 128
          %s1447 = scalar_lea.hbm %s4, %s1446
          %s1449 = sshll.u32 %s1436, 4
          %s1450 = int_to_ptr.vmem [resolvable:$true] %s1449
          %1452 = dma.vmem_to_hbm [thread:$0]  %s1450, 384, %s1447, %s1433
        $region40: #{tpu_custom_call.1} parent=35 // pred_fallthru
          _
      $region36: #{tpu_custom_call.1} parent=5 // pred_fallthru
        _
      %p1453 = scmp.le.s32.totalorder 2, %s13
      // Predicated region
      $region41: #{tpu_custom_call.1} parent=5 // pred_check
        %p1454 = pneg %p1453
      $region42: #{tpu_custom_call.1} parent=5 // pred_check_branch
        %1456 = sbr.rel (%p1454) target = $region44
      $region43: #{tpu_custom_call.1} parent=5 // pred_region
        %s1457 = ssub.s32 %s13, 2
        // Predicated region
        $region45: #{tpu_custom_call.1} parent=43 // pred_check
          %p1458 = pneg %p158
        $region46: #{tpu_custom_call.1} parent=43 // pred_check_branch
          %1460 = sbr.rel (%p1458) target = $region48
        $region47: #{tpu_custom_call.1} parent=43 // pred_region
          %s1461 = sand.u32 %s143, 1
          %s1462 = scalar_lea.sflag [#allocation4], %s1461
          %s1463 = sand.u32 %s143, 1
          %s1464 = smul.addr %s1463, 24
          %s1465 = scalar_lea.vmem [#allocation3], %s1464
          %1466 = dma.done %s1462, 384
        $region48: #{tpu_custom_call.1} parent=43 // pred_fallthru
          _
      $region44: #{tpu_custom_call.1} parent=5 // pred_fallthru
        _
    $region6: #{tpu_custom_call.1} parent=1 // loop_footer
      %s17 = sadd.s32 1, %s13
    $region7: #{tpu_custom_call.1} parent=1 // loop_footer_branch
      %12 = sbr.rel target = $region3
    $region8: #{tpu_custom_call.1} parent=1 // loop_exit
      _
    %1467 = vsyncpa [#allocation4], 1
    %s1468 = scalar_lea.sflag [#allocation4], 1
    %1469 = vsyncpa %s1468, 1

</llo_original>
